<compile_context>
chip_gen: v5e
topology: v5e:2x2
jax: 0.10.0
libtpu: 0.0.40
codegen_flags: <defaults>
</compile_context>

<pallas_src>
import numpy as np
import jax
import jax.numpy as jnp
from jax import lax
from jax.experimental import pallas as pl
from jax.experimental.pallas import tpu as pltpu

# ---------------- problem sizes (small, consistent with the forward) -------------
T = 8      # max_len (target.shape[0])
B = 4      # batch size
V = 32     # decoder.output_dim (vocab), extra_copy_vocab = 0
E = 16     # embedding dim
L = 24     # latent_rep dim
H = 32     # GRU hidden dim

SOS, EOS, UNK, PAD = 1, 2, 0, 3
TEACHER_FORCING_RATIO = 0.5


# --------------------------------- kernel ----------------------------------------
def rollout_kernel(tf_ref,        # SMEM (T,)      int32  teacher-force mask per step
                   latent_ref,    # (B, L)         f32
                   tgt_oh_ref,    # (T, B, V)      f32    precomputed teacher one-hots
                   w_init_ref,    # (L, H)         f32
                   b_init_ref,    # (1, H)         f32
                   w_gates_ref,   # (V+H, 4H)      f32    fused [WX_r|WX_z|WX_n|0 ; U_r|U_z|0|U_n]
                   wl_ref,        # (L, 4H)        f32    [W_l_r|W_l_z|W_l_n|0]
                   bg_ref,        # (1, 4H)        f32    [b_r|b_z|b_n|0]
                   w_out_ref,     # (H, V)         f32
                   b_out_ref,     # (1, V)         f32
                   out_ref,       # (T, B, V)      f32    output
                   pred_ref):     # (B, T)         int32  output (transposed in wrapper)
    # ---------- hoisted once: weights, iotas, time-invariant gate terms ----------
    latent = latent_ref[...]
    w_gates = w_gates_ref[...]                  # loop-invariant MXU RHS (lane-dense)
    w_out = w_out_ref[...]
    b_out = b_out_ref[...]
    iota_v = lax.broadcasted_iota(jnp.int32, (B, V), 1)
    iota_t = lax.broadcasted_iota(jnp.int32, (B, T), 1)

    # latent + bias contribution for all three gates, packed into one (B, 4H) constant
    gate_const = (jnp.dot(latent, wl_ref[...], preferred_element_type=jnp.float32)
                  + bg_ref[...])                # (B, 4H)

    # hidden = decoder.get_initial_hidden(latent_rep); decoder input starts at <sos>
    h = jnp.tanh(jnp.dot(latent, w_init_ref[...], preferred_element_type=jnp.float32)
                 + b_init_ref[...])             # (B, H)
    prev_oh = (iota_v == SOS).astype(jnp.float32)   # (B, V) one-hot of current input

    preds = jnp.full((B, T), SOS, jnp.int32)        # column t = prediction at step t
    out_ref[0] = jnp.zeros((B, V), jnp.float32)     # outputs[0] stays zero

    # ---------- statically unrolled time loop, state carried in vregs ----------
    for t in range(1, T):
        # one fused gate matmul per step: [prev_oh | h] @ [WX|U packed]
        lhs = jnp.concatenate([prev_oh, h], axis=1)                       # (B, V+H)
        pre = jnp.dot(lhs, w_gates, preferred_element_type=jnp.float32) + gate_const
        r = jax.nn.sigmoid(pre[:, 0:H])
        z = jax.nn.sigmoid(pre[:, H:2 * H])
        n = jnp.tanh(pre[:, 2 * H:3 * H] + r * pre[:, 3 * H:4 * H])
        h = (1.0 - z) * n + z * h

        logits = jnp.dot(h, w_out, preferred_element_type=jnp.float32) + b_out  # (B, V)
        out_ref[t] = logits                          # per-step store (vst slot is idle)

        # top1 = gen_output.max(1)[1]  (first maximal index, exact)
        m = jnp.max(logits, axis=1, keepdims=True)
        top1 = jnp.min(jnp.where(logits == m, iota_v, V),
                       axis=1, keepdims=True).astype(jnp.int32)   # (B, 1)
        preds = jnp.where(iota_t == t, top1, preds)

        # next decoder input: teacher token (precomputed one-hot) or model argmax
        top1_oh = (top1 == iota_v).astype(jnp.float32)
        prev_oh = jnp.where(tf_ref[t] > 0, tgt_oh_ref[t], top1_oh)

    pred_ref[...] = preds                            # tiny (B, T) int32, single store


@jax.jit
def rollout_decoder_forward(latent, target, tf_mask, params):
    """latent: (B, L) f32, target: (T, B) int32, tf_mask: (T,) int32."""
    f32 = jnp.float32
    # fold the embedding table into the input->gate weights: Emb[token] @ W_e_g
    # == onehot(token) @ (Emb @ W_e_g)
    wx = jnp.einsum("ve,geh->gvh", params["emb"], params["w_e"])   # (3, V, H)
    u = params["u"]                                                # (3, H, H)

    # fused gate RHS (V+H, 4H): lane groups are [r | z | xn | hn]
    top = jnp.concatenate([wx[0], wx[1], wx[2], jnp.zeros((V, H), f32)], axis=1)  # (V, 4H)
    bot = jnp.concatenate([u[0], u[1], jnp.zeros((H, H), f32), u[2]], axis=1)     # (H, 4H)
    w_gates = jnp.concatenate([top, bot], axis=0)                                 # (V+H, 4H)

    # packed latent->gate weights and biases, same lane groups (hn group = 0)
    wl_packed = jnp.concatenate([params["w_l"][0], params["w_l"][1], params["w_l"][2],
                                 jnp.zeros((L, H), f32)], axis=1)                 # (L, 4H)
    bg_packed = jnp.concatenate([params["b"][0], params["b"][1], params["b"][2],
                                 jnp.zeros((1, H), f32)], axis=1)                 # (1, 4H)

    tgt_oh = jax.nn.one_hot(target, V, dtype=f32)                                 # (T, B, V)

    vmem = pl.BlockSpec(memory_space=pltpu.MemorySpace.VMEM)
    smem = pl.BlockSpec(memory_space=pltpu.MemorySpace.SMEM)
    in_specs = [
        smem,          # tf_mask
        vmem,          # latent
        vmem,          # teacher one-hots
        vmem, vmem,    # W_init, b_init
        vmem,          # fused gate RHS
        vmem, vmem,    # packed W_l, packed b
        vmem, vmem,    # W_out, b_out
    ]
    out_specs = (vmem, vmem)
    out_shape = (jax.ShapeDtypeStruct((T, B, V), f32),
                 jax.ShapeDtypeStruct((B, T), jnp.int32))

    outputs, preds_bt = pl.pallas_call(
        rollout_kernel,
        out_shape=out_shape,
        in_specs=in_specs,
        out_specs=out_specs,
    )(tf_mask, latent, tgt_oh,
      params["w_init"], params["b_init"],
      w_gates, wl_packed, bg_packed,
      params["w_out"], params["b_out"])
    return outputs, preds_bt.T


# ------------------------------ pure-numpy reference ------------------------------
def reference_forward(latent, target, tf_mask, params):
    p = {k: np.asarray(v, np.float32) for k, v in params.items()}
    latent = np.asarray(latent, np.float32)
    target = np.asarray(target)
    sigmoid = lambda x: 1.0 / (1.0 + np.exp(-x))
    outputs = np.zeros((T, B, V), np.float32)
    preds = np.full((T, B), SOS, np.int32)
    h = np.tanh(latent @ p["w_init"] + p["b_init"])
    token = np.full((B,), SOS, np.int64)
    for t in range(1, T):
        emb = p["emb"][token]
        r = sigmoid(emb @ p["w_e"][0] + latent @ p["w_l"][0] + h @ p["u"][0] + p["b"][0])
        z = sigmoid(emb @ p["w_e"][1] + latent @ p["w_l"][1] + h @ p["u"][1] + p["b"][1])
        n = np.tanh(emb @ p["w_e"][2] + latent @ p["w_l"][2] + r * (h @ p["u"][2]) + p["b"][2])
        h = (1.0 - z) * n + z * h
        logits = h @ p["w_out"] + p["b_out"]
        outputs[t] = logits
        top1 = logits.argmax(1)
        preds[t] = top1
        token = target[t] if tf_mask[t] > 0 else top1
    return outputs, preds


# ------------------------------------ main -----------------------------------------
if __name__ == "__main__":
    key = jax.random.PRNGKey(0)
    keys = jax.random.split(key, 16)

    def init(k, shape, fan_in):
        return (jax.random.normal(k, shape, jnp.float32) / np.sqrt(fan_in)).astype(jnp.float32)

    params = {
        "emb":    init(keys[0], (V, E), V),
        "w_init": init(keys[1], (L, H), L),
        "b_init": jnp.zeros((1, H), jnp.float32),
        "w_e":    init(keys[2], (3, E, H), E),
        "w_l":    init(keys[3], (3, L, H), L),
        "u":      init(keys[4], (3, H, H), H),
        "b":      jnp.zeros((3, 1, H), jnp.float32),
        "w_out":  init(keys[5], (H, V), H),
        "b_out":  jnp.zeros((1, V), jnp.float32),
    }

    latent = jax.random.normal(keys[6], (B, L), jnp.float32)
    target = jax.random.randint(keys[7], (T, B), 0, V, jnp.int32)
    # deterministic replacement for per-step random.random() < teacher_forcing_ratio
    tf_mask = jax.random.bernoulli(keys[8], TEACHER_FORCING_RATIO, (T,)).astype(jnp.int32)

    outputs, predictions = jax.block_until_ready(
        rollout_decoder_forward(latent, target, tf_mask, params))

    ref_out, ref_pred = reference_forward(latent, target, np.asarray(tf_mask), params)
    np.testing.assert_allclose(np.asarray(outputs), ref_out, atol=1e-2, rtol=1e-2)
    assert np.array_equal(np.asarray(predictions), ref_pred), "predictions mismatch"

    print("KERNEL_OK")
</pallas_src>

<mosaic_0001>
module attributes {stable_mosaic.version = 11 : i64} {
  func.func @rollout_kernel(%arg0: memref<8xi32, #tpu.memory_space<smem>>, %arg1: memref<4x24xf32, #tpu.memory_space<vmem>>, %arg2: memref<8x4x32xf32, #tpu.memory_space<vmem>>, %arg3: memref<24x32xf32, #tpu.memory_space<vmem>>, %arg4: memref<1x32xf32, #tpu.memory_space<vmem>>, %arg5: memref<64x128xf32, #tpu.memory_space<vmem>>, %arg6: memref<24x128xf32, #tpu.memory_space<vmem>>, %arg7: memref<1x128xf32, #tpu.memory_space<vmem>>, %arg8: memref<32x32xf32, #tpu.memory_space<vmem>>, %arg9: memref<1x32xf32, #tpu.memory_space<vmem>>, %arg10: memref<8x4x32xf32, #tpu.memory_space<vmem>>, %arg11: memref<4x8xi32, #tpu.memory_space<vmem>>) attributes {dimension_semantics = [], scalar_prefetch = 0 : i64, scratch_operands = 0 : i64, tpu.core_type = #tpu.core_type<tc>} {
    %c0 = arith.constant 0 : index
    %c0_0 = arith.constant 0 : index
    %0 = vector.load %arg1[%c0, %c0_0] : memref<4x24xf32, #tpu.memory_space<vmem>>, vector<4x24xf32>
    %c0_1 = arith.constant 0 : index
    %c0_2 = arith.constant 0 : index
    %1 = vector.load %arg5[%c0_1, %c0_2] : memref<64x128xf32, #tpu.memory_space<vmem>>, vector<64x128xf32>
    %c0_3 = arith.constant 0 : index
    %c0_4 = arith.constant 0 : index
    %2 = vector.load %arg8[%c0_3, %c0_4] : memref<32x32xf32, #tpu.memory_space<vmem>>, vector<32x32xf32>
    %c0_5 = arith.constant 0 : index
    %c0_6 = arith.constant 0 : index
    %3 = vector.load %arg9[%c0_5, %c0_6] : memref<1x32xf32, #tpu.memory_space<vmem>>, vector<1x32xf32>
    %4 = tpu.iota {dimensions = array<i32: 1>} : vector<4x32xi32>
    %5 = tpu.iota {dimensions = array<i32: 1>} : vector<4x8xi32>
    %c0_7 = arith.constant 0 : index
    %c0_8 = arith.constant 0 : index
    %6 = vector.load %arg6[%c0_7, %c0_8] : memref<24x128xf32, #tpu.memory_space<vmem>>, vector<24x128xf32>
    %cst = arith.constant dense<0.000000e+00> : vector<4x128xf32>
    %7 = tpu.matmul %0, %6, %cst {dimension_numbers = #tpu.dot_dimension_numbers<[1], [0], [0], [1], [0, 0, 1, 1], [], []>} : vector<4x24xf32>, vector<24x128xf32>, vector<4x128xf32> -> vector<4x128xf32>
    %c0_9 = arith.constant 0 : index
    %c0_10 = arith.constant 0 : index
    %8 = vector.load %arg7[%c0_9, %c0_10] : memref<1x128xf32, #tpu.memory_space<vmem>>, vector<1x128xf32>
    %9 = vector.broadcast %8 : vector<1x128xf32> to vector<4x128xf32>
    %10 = arith.addf %7, %9 : vector<4x128xf32>
    %c0_11 = arith.constant 0 : index
    %c0_12 = arith.constant 0 : index
    %11 = vector.load %arg3[%c0_11, %c0_12] : memref<24x32xf32, #tpu.memory_space<vmem>>, vector<24x32xf32>
    %cst_13 = arith.constant dense<0.000000e+00> : vector<4x32xf32>
    %12 = tpu.matmul %0, %11, %cst_13 {dimension_numbers = #tpu.dot_dimension_numbers<[1], [0], [0], [1], [0, 0, 1, 1], [], []>} : vector<4x24xf32>, vector<24x32xf32>, vector<4x32xf32> -> vector<4x32xf32>
    %c0_14 = arith.constant 0 : index
    %c0_15 = arith.constant 0 : index
    %13 = vector.load %arg4[%c0_14, %c0_15] : memref<1x32xf32, #tpu.memory_space<vmem>>, vector<1x32xf32>
    %14 = vector.broadcast %13 : vector<1x32xf32> to vector<4x32xf32>
    %15 = arith.addf %12, %14 : vector<4x32xf32>
    %16 = math.tanh %15 : vector<4x32xf32>
    %c1_i32 = arith.constant 1 : i32
    %17 = vector.broadcast %c1_i32 : i32 to vector<4x32xi32>
    %18 = arith.cmpi eq, %4, %17 : vector<4x32xi32>
    %19 = arith.extui %18 : vector<4x32xi1> to vector<4x32xi32>
    %20 = arith.sitofp %19 : vector<4x32xi32> to vector<4x32xf32>
    %c1_i32_16 = arith.constant 1 : i32
    %21 = vector.broadcast %c1_i32_16 : i32 to vector<4x8xi32>
    %cst_17 = arith.constant 0.000000e+00 : f32
    %22 = vector.broadcast %cst_17 : f32 to vector<4x32xf32>
    %c0_18 = arith.constant 0 : index
    %c0_19 = arith.constant 0 : index
    %c0_20 = arith.constant 0 : index
    %23 = vector.load %arg10[%c0_18, %c0_19, %c0_20] : memref<8x4x32xf32, #tpu.memory_space<vmem>>, vector<1x4x32xf32>
    %24 = vector.shape_cast %23 : vector<1x4x32xf32> to vector<4x32xf32>
    %25 = vector.shape_cast %22 : vector<4x32xf32> to vector<1x4x32xf32>
    tpu.vector_store %arg10[%c0_18, %c0_19, %c0_20], %25 {strides = array<i32>} : memref<8x4x32xf32, #tpu.memory_space<vmem>>, vector<1x4x32xf32>,
    %26 = tpu.concatenate %20, %16 in 1 : vector<4x32xf32>, vector<4x32xf32> -> vector<4x64xf32>
    %cst_21 = arith.constant dense<0.000000e+00> : vector<4x128xf32>
    %27 = tpu.matmul %26, %1, %cst_21 {dimension_numbers = #tpu.dot_dimension_numbers<[1], [0], [0], [1], [0, 0, 1, 1], [], []>} : vector<4x64xf32>, vector<64x128xf32>, vector<4x128xf32> -> vector<4x128xf32>
    %28 = arith.addf %27, %10 : vector<4x128xf32>
    %29 = vector.extract_strided_slice %28 {offsets = [0, 0], sizes = [4, 32], strides = [1, 1]} : vector<4x128xf32> to vector<4x32xf32>
    %30 = arith.negf %29 : vector<4x32xf32>
    %31 = math.exp %30 : vector<4x32xf32>
    %cst_22 = arith.constant 1.000000e+00 : f32
    %32 = vector.broadcast %cst_22 : f32 to vector<4x32xf32>
    %33 = arith.addf %32, %31 : vector<4x32xf32>
    %34 = arith.divf %32, %33 : vector<4x32xf32>
    %35 = vector.extract_strided_slice %28 {offsets = [0, 32], sizes = [4, 32], strides = [1, 1]} : vector<4x128xf32> to vector<4x32xf32>
    %36 = arith.negf %35 : vector<4x32xf32>
    %37 = math.exp %36 : vector<4x32xf32>
    %cst_23 = arith.constant 1.000000e+00 : f32
    %38 = vector.broadcast %cst_23 : f32 to vector<4x32xf32>
    %39 = arith.addf %38, %37 : vector<4x32xf32>
    %40 = arith.divf %38, %39 : vector<4x32xf32>
    %41 = vector.extract_strided_slice %28 {offsets = [0, 64], sizes = [4, 32], strides = [1, 1]} : vector<4x128xf32> to vector<4x32xf32>
    %42 = vector.extract_strided_slice %28 {offsets = [0, 96], sizes = [4, 32], strides = [1, 1]} : vector<4x128xf32> to vector<4x32xf32>
    %43 = arith.mulf %34, %42 : vector<4x32xf32>
    %44 = arith.addf %41, %43 : vector<4x32xf32>
    %45 = math.tanh %44 : vector<4x32xf32>
    %cst_24 = arith.constant 1.000000e+00 : f32
    %46 = vector.broadcast %cst_24 : f32 to vector<4x32xf32>
    %47 = arith.subf %46, %40 : vector<4x32xf32>
    %48 = arith.mulf %47, %45 : vector<4x32xf32>
    %49 = arith.mulf %40, %16 : vector<4x32xf32>
    %50 = arith.addf %48, %49 : vector<4x32xf32>
    %cst_25 = arith.constant dense<0.000000e+00> : vector<4x32xf32>
    %51 = tpu.matmul %50, %2, %cst_25 {dimension_numbers = #tpu.dot_dimension_numbers<[1], [0], [0], [1], [0, 0, 1, 1], [], []>} : vector<4x32xf32>, vector<32x32xf32>, vector<4x32xf32> -> vector<4x32xf32>
    %52 = vector.broadcast %3 : vector<1x32xf32> to vector<4x32xf32>
    %53 = arith.addf %51, %52 : vector<4x32xf32>
    %c1 = arith.constant 1 : index
    %c0_26 = arith.constant 0 : index
    %c0_27 = arith.constant 0 : index
    %54 = vector.load %arg10[%c1, %c0_26, %c0_27] : memref<8x4x32xf32, #tpu.memory_space<vmem>>, vector<1x4x32xf32>
    %55 = vector.shape_cast %54 : vector<1x4x32xf32> to vector<4x32xf32>
    %56 = vector.shape_cast %53 : vector<4x32xf32> to vector<1x4x32xf32>
    tpu.vector_store %arg10[%c1, %c0_26, %c0_27], %56 {strides = array<i32>} : memref<8x4x32xf32, #tpu.memory_space<vmem>>, vector<1x4x32xf32>,
    %cst_28 = arith.constant dense<0xFF800000> : vector<4xf32>
    %57 = vector.multi_reduction <maximumf>, %53, %cst_28 [1] : vector<4x32xf32> to vector<4xf32>
    %58 = vector.shape_cast %57 : vector<4xf32> to vector<4x1xf32>
    %59 = vector.broadcast %58 : vector<4x1xf32> to vector<4x32xf32>
    %60 = arith.cmpf oeq, %53, %59 : vector<4x32xf32>
    %c32_i32 = arith.constant 32 : i32
    %61 = vector.broadcast %c32_i32 : i32 to vector<4x32xi32>
    %62 = arith.select %60, %4, %61 : vector<4x32xi1>, vector<4x32xi32>
    %cst_29 = arith.constant dense<2147483647> : vector<4xi32>
    %63 = vector.multi_reduction <minsi>, %62, %cst_29 [1] : vector<4x32xi32> to vector<4xi32>
    %64 = vector.shape_cast %63 : vector<4xi32> to vector<4x1xi32>
    %c1_i32_30 = arith.constant 1 : i32
    %65 = vector.broadcast %c1_i32_30 : i32 to vector<4x8xi32>
    %66 = arith.cmpi eq, %5, %65 : vector<4x8xi32>
    %67 = vector.shape_cast %64 : vector<4x1xi32> to vector<4x1xi32>
    %68 = vector.broadcast %67 : vector<4x1xi32> to vector<4x8xi32>
    %69 = arith.select %66, %68, %21 : vector<4x8xi1>, vector<4x8xi32>
    %70 = vector.broadcast %64 : vector<4x1xi32> to vector<4x32xi32>
    %71 = arith.cmpi eq, %70, %4 : vector<4x32xi32>
    %72 = arith.extui %71 : vector<4x32xi1> to vector<4x32xi32>
    %73 = arith.sitofp %72 : vector<4x32xi32> to vector<4x32xf32>
    %c1_31 = arith.constant 1 : index
    %74 = memref.load %arg0[%c1_31] : memref<8xi32, #tpu.memory_space<smem>>
    %c0_i32 = arith.constant 0 : i32
    %75 = arith.cmpi sgt, %74, %c0_i32 : i32
    %c1_32 = arith.constant 1 : index
    %c0_33 = arith.constant 0 : index
    %c0_34 = arith.constant 0 : index
    %76 = vector.load %arg2[%c1_32, %c0_33, %c0_34] : memref<8x4x32xf32, #tpu.memory_space<vmem>>, vector<1x4x32xf32>
    %77 = vector.shape_cast %76 : vector<1x4x32xf32> to vector<4x32xf32>
    %78 = arith.select %75, %77, %73 : vector<4x32xf32>
    %79 = tpu.concatenate %78, %50 in 1 : vector<4x32xf32>, vector<4x32xf32> -> vector<4x64xf32>
    %cst_35 = arith.constant dense<0.000000e+00> : vector<4x128xf32>
    %80 = tpu.matmul %79, %1, %cst_35 {dimension_numbers = #tpu.dot_dimension_numbers<[1], [0], [0], [1], [0, 0, 1, 1], [], []>} : vector<4x64xf32>, vector<64x128xf32>, vector<4x128xf32> -> vector<4x128xf32>
    %81 = arith.addf %80, %10 : vector<4x128xf32>
    %82 = vector.extract_strided_slice %81 {offsets = [0, 0], sizes = [4, 32], strides = [1, 1]} : vector<4x128xf32> to vector<4x32xf32>
    %83 = arith.negf %82 : vector<4x32xf32>
    %84 = math.exp %83 : vector<4x32xf32>
    %cst_36 = arith.constant 1.000000e+00 : f32
    %85 = vector.broadcast %cst_36 : f32 to vector<4x32xf32>
    %86 = arith.addf %85, %84 : vector<4x32xf32>
    %87 = arith.divf %85, %86 : vector<4x32xf32>
    %88 = vector.extract_strided_slice %81 {offsets = [0, 32], sizes = [4, 32], strides = [1, 1]} : vector<4x128xf32> to vector<4x32xf32>
    %89 = arith.negf %88 : vector<4x32xf32>
    %90 = math.exp %89 : vector<4x32xf32>
    %cst_37 = arith.constant 1.000000e+00 : f32
    %91 = vector.broadcast %cst_37 : f32 to vector<4x32xf32>
    %92 = arith.addf %91, %90 : vector<4x32xf32>
    %93 = arith.divf %91, %92 : vector<4x32xf32>
    %94 = vector.extract_strided_slice %81 {offsets = [0, 64], sizes = [4, 32], strides = [1, 1]} : vector<4x128xf32> to vector<4x32xf32>
    %95 = vector.extract_strided_slice %81 {offsets = [0, 96], sizes = [4, 32], strides = [1, 1]} : vector<4x128xf32> to vector<4x32xf32>
    %96 = arith.mulf %87, %95 : vector<4x32xf32>
    %97 = arith.addf %94, %96 : vector<4x32xf32>
    %98 = math.tanh %97 : vector<4x32xf32>
    %cst_38 = arith.constant 1.000000e+00 : f32
    %99 = vector.broadcast %cst_38 : f32 to vector<4x32xf32>
    %100 = arith.subf %99, %93 : vector<4x32xf32>
    %101 = arith.mulf %100, %98 : vector<4x32xf32>
    %102 = arith.mulf %93, %50 : vector<4x32xf32>
    %103 = arith.addf %101, %102 : vector<4x32xf32>
    %cst_39 = arith.constant dense<0.000000e+00> : vector<4x32xf32>
    %104 = tpu.matmul %103, %2, %cst_39 {dimension_numbers = #tpu.dot_dimension_numbers<[1], [0], [0], [1], [0, 0, 1, 1], [], []>} : vector<4x32xf32>, vector<32x32xf32>, vector<4x32xf32> -> vector<4x32xf32>
    %105 = vector.broadcast %3 : vector<1x32xf32> to vector<4x32xf32>
    %106 = arith.addf %104, %105 : vector<4x32xf32>
    %c2 = arith.constant 2 : index
    %c0_40 = arith.constant 0 : index
    %c0_41 = arith.constant 0 : index
    %107 = vector.load %arg10[%c2, %c0_40, %c0_41] : memref<8x4x32xf32, #tpu.memory_space<vmem>>, vector<1x4x32xf32>
    %108 = vector.shape_cast %107 : vector<1x4x32xf32> to vector<4x32xf32>
    %109 = vector.shape_cast %106 : vector<4x32xf32> to vector<1x4x32xf32>
    tpu.vector_store %arg10[%c2, %c0_40, %c0_41], %109 {strides = array<i32>} : memref<8x4x32xf32, #tpu.memory_space<vmem>>, vector<1x4x32xf32>,
    %cst_42 = arith.constant dense<0xFF800000> : vector<4xf32>
    %110 = vector.multi_reduction <maximumf>, %106, %cst_42 [1] : vector<4x32xf32> to vector<4xf32>
    %111 = vector.shape_cast %110 : vector<4xf32> to vector<4x1xf32>
    %112 = vector.broadcast %111 : vector<4x1xf32> to vector<4x32xf32>
    %113 = arith.cmpf oeq, %106, %112 : vector<4x32xf32>
    %c32_i32_43 = arith.constant 32 : i32
    %114 = vector.broadcast %c32_i32_43 : i32 to vector<4x32xi32>
    %115 = arith.select %113, %4, %114 : vector<4x32xi1>, vector<4x32xi32>
    %cst_44 = arith.constant dense<2147483647> : vector<4xi32>
    %116 = vector.multi_reduction <minsi>, %115, %cst_44 [1] : vector<4x32xi32> to vector<4xi32>
    %117 = vector.shape_cast %116 : vector<4xi32> to vector<4x1xi32>
    %c2_i32 = arith.constant 2 : i32
    %118 = vector.broadcast %c2_i32 : i32 to vector<4x8xi32>
    %119 = arith.cmpi eq, %5, %118 : vector<4x8xi32>
    %120 = vector.shape_cast %117 : vector<4x1xi32> to vector<4x1xi32>
    %121 = vector.broadcast %120 : vector<4x1xi32> to vector<4x8xi32>
    %122 = arith.select %119, %121, %69 : vector<4x8xi1>, vector<4x8xi32>
    %123 = vector.broadcast %117 : vector<4x1xi32> to vector<4x32xi32>
    %124 = arith.cmpi eq, %123, %4 : vector<4x32xi32>
    %125 = arith.extui %124 : vector<4x32xi1> to vector<4x32xi32>
    %126 = arith.sitofp %125 : vector<4x32xi32> to vector<4x32xf32>
    %c2_45 = arith.constant 2 : index
    %127 = memref.load %arg0[%c2_45] : memref<8xi32, #tpu.memory_space<smem>>
    %c0_i32_46 = arith.constant 0 : i32
    %128 = arith.cmpi sgt, %127, %c0_i32_46 : i32
    %c2_47 = arith.constant 2 : index
    %c0_48 = arith.constant 0 : index
    %c0_49 = arith.constant 0 : index
    %129 = vector.load %arg2[%c2_47, %c0_48, %c0_49] : memref<8x4x32xf32, #tpu.memory_space<vmem>>, vector<1x4x32xf32>
    %130 = vector.shape_cast %129 : vector<1x4x32xf32> to vector<4x32xf32>
    %131 = arith.select %128, %130, %126 : vector<4x32xf32>
    %132 = tpu.concatenate %131, %103 in 1 : vector<4x32xf32>, vector<4x32xf32> -> vector<4x64xf32>
    %cst_50 = arith.constant dense<0.000000e+00> : vector<4x128xf32>
    %133 = tpu.matmul %132, %1, %cst_50 {dimension_numbers = #tpu.dot_dimension_numbers<[1], [0], [0], [1], [0, 0, 1, 1], [], []>} : vector<4x64xf32>, vector<64x128xf32>, vector<4x128xf32> -> vector<4x128xf32>
    %134 = arith.addf %133, %10 : vector<4x128xf32>
    %135 = vector.extract_strided_slice %134 {offsets = [0, 0], sizes = [4, 32], strides = [1, 1]} : vector<4x128xf32> to vector<4x32xf32>
    %136 = arith.negf %135 : vector<4x32xf32>
    %137 = math.exp %136 : vector<4x32xf32>
    %cst_51 = arith.constant 1.000000e+00 : f32
    %138 = vector.broadcast %cst_51 : f32 to vector<4x32xf32>
    %139 = arith.addf %138, %137 : vector<4x32xf32>
    %140 = arith.divf %138, %139 : vector<4x32xf32>
    %141 = vector.extract_strided_slice %134 {offsets = [0, 32], sizes = [4, 32], strides = [1, 1]} : vector<4x128xf32> to vector<4x32xf32>
    %142 = arith.negf %141 : vector<4x32xf32>
    %143 = math.exp %142 : vector<4x32xf32>
    %cst_52 = arith.constant 1.000000e+00 : f32
    %144 = vector.broadcast %cst_52 : f32 to vector<4x32xf32>
    %145 = arith.addf %144, %143 : vector<4x32xf32>
    %146 = arith.divf %144, %145 : vector<4x32xf32>
    %147 = vector.extract_strided_slice %134 {offsets = [0, 64], sizes = [4, 32], strides = [1, 1]} : vector<4x128xf32> to vector<4x32xf32>
    %148 = vector.extract_strided_slice %134 {offsets = [0, 96], sizes = [4, 32], strides = [1, 1]} : vector<4x128xf32> to vector<4x32xf32>
    %149 = arith.mulf %140, %148 : vector<4x32xf32>
    %150 = arith.addf %147, %149 : vector<4x32xf32>
    %151 = math.tanh %150 : vector<4x32xf32>
    %cst_53 = arith.constant 1.000000e+00 : f32
    %152 = vector.broadcast %cst_53 : f32 to vector<4x32xf32>
    %153 = arith.subf %152, %146 : vector<4x32xf32>
    %154 = arith.mulf %153, %151 : vector<4x32xf32>
    %155 = arith.mulf %146, %103 : vector<4x32xf32>
    %156 = arith.addf %154, %155 : vector<4x32xf32>
    %cst_54 = arith.constant dense<0.000000e+00> : vector<4x32xf32>
    %157 = tpu.matmul %156, %2, %cst_54 {dimension_numbers = #tpu.dot_dimension_numbers<[1], [0], [0], [1], [0, 0, 1, 1], [], []>} : vector<4x32xf32>, vector<32x32xf32>, vector<4x32xf32> -> vector<4x32xf32>
    %158 = vector.broadcast %3 : vector<1x32xf32> to vector<4x32xf32>
    %159 = arith.addf %157, %158 : vector<4x32xf32>
    %c3 = arith.constant 3 : index
    %c0_55 = arith.constant 0 : index
    %c0_56 = arith.constant 0 : index
    %160 = vector.load %arg10[%c3, %c0_55, %c0_56] : memref<8x4x32xf32, #tpu.memory_space<vmem>>, vector<1x4x32xf32>
    %161 = vector.shape_cast %160 : vector<1x4x32xf32> to vector<4x32xf32>
    %162 = vector.shape_cast %159 : vector<4x32xf32> to vector<1x4x32xf32>
    tpu.vector_store %arg10[%c3, %c0_55, %c0_56], %162 {strides = array<i32>} : memref<8x4x32xf32, #tpu.memory_space<vmem>>, vector<1x4x32xf32>,
    %cst_57 = arith.constant dense<0xFF800000> : vector<4xf32>
    %163 = vector.multi_reduction <maximumf>, %159, %cst_57 [1] : vector<4x32xf32> to vector<4xf32>
    %164 = vector.shape_cast %163 : vector<4xf32> to vector<4x1xf32>
    %165 = vector.broadcast %164 : vector<4x1xf32> to vector<4x32xf32>
    %166 = arith.cmpf oeq, %159, %165 : vector<4x32xf32>
    %c32_i32_58 = arith.constant 32 : i32
    %167 = vector.broadcast %c32_i32_58 : i32 to vector<4x32xi32>
    %168 = arith.select %166, %4, %167 : vector<4x32xi1>, vector<4x32xi32>
    %cst_59 = arith.constant dense<2147483647> : vector<4xi32>
    %169 = vector.multi_reduction <minsi>, %168, %cst_59 [1] : vector<4x32xi32> to vector<4xi32>
    %170 = vector.shape_cast %169 : vector<4xi32> to vector<4x1xi32>
    %c3_i32 = arith.constant 3 : i32
    %171 = vector.broadcast %c3_i32 : i32 to vector<4x8xi32>
    %172 = arith.cmpi eq, %5, %171 : vector<4x8xi32>
    %173 = vector.shape_cast %170 : vector<4x1xi32> to vector<4x1xi32>
    %174 = vector.broadcast %173 : vector<4x1xi32> to vector<4x8xi32>
    %175 = arith.select %172, %174, %122 : vector<4x8xi1>, vector<4x8xi32>
    %176 = vector.broadcast %170 : vector<4x1xi32> to vector<4x32xi32>
    %177 = arith.cmpi eq, %176, %4 : vector<4x32xi32>
    %178 = arith.extui %177 : vector<4x32xi1> to vector<4x32xi32>
    %179 = arith.sitofp %178 : vector<4x32xi32> to vector<4x32xf32>
    %c3_60 = arith.constant 3 : index
    %180 = memref.load %arg0[%c3_60] : memref<8xi32, #tpu.memory_space<smem>>
    %c0_i32_61 = arith.constant 0 : i32
    %181 = arith.cmpi sgt, %180, %c0_i32_61 : i32
    %c3_62 = arith.constant 3 : index
    %c0_63 = arith.constant 0 : index
    %c0_64 = arith.constant 0 : index
    %182 = vector.load %arg2[%c3_62, %c0_63, %c0_64] : memref<8x4x32xf32, #tpu.memory_space<vmem>>, vector<1x4x32xf32>
    %183 = vector.shape_cast %182 : vector<1x4x32xf32> to vector<4x32xf32>
    %184 = arith.select %181, %183, %179 : vector<4x32xf32>
    %185 = tpu.concatenate %184, %156 in 1 : vector<4x32xf32>, vector<4x32xf32> -> vector<4x64xf32>
    %cst_65 = arith.constant dense<0.000000e+00> : vector<4x128xf32>
    %186 = tpu.matmul %185, %1, %cst_65 {dimension_numbers = #tpu.dot_dimension_numbers<[1], [0], [0], [1], [0, 0, 1, 1], [], []>} : vector<4x64xf32>, vector<64x128xf32>, vector<4x128xf32> -> vector<4x128xf32>
    %187 = arith.addf %186, %10 : vector<4x128xf32>
    %188 = vector.extract_strided_slice %187 {offsets = [0, 0], sizes = [4, 32], strides = [1, 1]} : vector<4x128xf32> to vector<4x32xf32>
    %189 = arith.negf %188 : vector<4x32xf32>
    %190 = math.exp %189 : vector<4x32xf32>
    %cst_66 = arith.constant 1.000000e+00 : f32
    %191 = vector.broadcast %cst_66 : f32 to vector<4x32xf32>
    %192 = arith.addf %191, %190 : vector<4x32xf32>
    %193 = arith.divf %191, %192 : vector<4x32xf32>
    %194 = vector.extract_strided_slice %187 {offsets = [0, 32], sizes = [4, 32], strides = [1, 1]} : vector<4x128xf32> to vector<4x32xf32>
    %195 = arith.negf %194 : vector<4x32xf32>
    %196 = math.exp %195 : vector<4x32xf32>
    %cst_67 = arith.constant 1.000000e+00 : f32
    %197 = vector.broadcast %cst_67 : f32 to vector<4x32xf32>
    %198 = arith.addf %197, %196 : vector<4x32xf32>
    %199 = arith.divf %197, %198 : vector<4x32xf32>
    %200 = vector.extract_strided_slice %187 {offsets = [0, 64], sizes = [4, 32], strides = [1, 1]} : vector<4x128xf32> to vector<4x32xf32>
    %201 = vector.extract_strided_slice %187 {offsets = [0, 96], sizes = [4, 32], strides = [1, 1]} : vector<4x128xf32> to vector<4x32xf32>
    %202 = arith.mulf %193, %201 : vector<4x32xf32>
    %203 = arith.addf %200, %202 : vector<4x32xf32>
    %204 = math.tanh %203 : vector<4x32xf32>
    %cst_68 = arith.constant 1.000000e+00 : f32
    %205 = vector.broadcast %cst_68 : f32 to vector<4x32xf32>
    %206 = arith.subf %205, %199 : vector<4x32xf32>
    %207 = arith.mulf %206, %204 : vector<4x32xf32>
    %208 = arith.mulf %199, %156 : vector<4x32xf32>
    %209 = arith.addf %207, %208 : vector<4x32xf32>
    %cst_69 = arith.constant dense<0.000000e+00> : vector<4x32xf32>
    %210 = tpu.matmul %209, %2, %cst_69 {dimension_numbers = #tpu.dot_dimension_numbers<[1], [0], [0], [1], [0, 0, 1, 1], [], []>} : vector<4x32xf32>, vector<32x32xf32>, vector<4x32xf32> -> vector<4x32xf32>
    %211 = vector.broadcast %3 : vector<1x32xf32> to vector<4x32xf32>
    %212 = arith.addf %210, %211 : vector<4x32xf32>
    %c4 = arith.constant 4 : index
    %c0_70 = arith.constant 0 : index
    %c0_71 = arith.constant 0 : index
    %213 = vector.load %arg10[%c4, %c0_70, %c0_71] : memref<8x4x32xf32, #tpu.memory_space<vmem>>, vector<1x4x32xf32>
    %214 = vector.shape_cast %213 : vector<1x4x32xf32> to vector<4x32xf32>
    %215 = vector.shape_cast %212 : vector<4x32xf32> to vector<1x4x32xf32>
    tpu.vector_store %arg10[%c4, %c0_70, %c0_71], %215 {strides = array<i32>} : memref<8x4x32xf32, #tpu.memory_space<vmem>>, vector<1x4x32xf32>,
    %cst_72 = arith.constant dense<0xFF800000> : vector<4xf32>
    %216 = vector.multi_reduction <maximumf>, %212, %cst_72 [1] : vector<4x32xf32> to vector<4xf32>
    %217 = vector.shape_cast %216 : vector<4xf32> to vector<4x1xf32>
    %218 = vector.broadcast %217 : vector<4x1xf32> to vector<4x32xf32>
    %219 = arith.cmpf oeq, %212, %218 : vector<4x32xf32>
    %c32_i32_73 = arith.constant 32 : i32
    %220 = vector.broadcast %c32_i32_73 : i32 to vector<4x32xi32>
    %221 = arith.select %219, %4, %220 : vector<4x32xi1>, vector<4x32xi32>
    %cst_74 = arith.constant dense<2147483647> : vector<4xi32>
    %222 = vector.multi_reduction <minsi>, %221, %cst_74 [1] : vector<4x32xi32> to vector<4xi32>
    %223 = vector.shape_cast %222 : vector<4xi32> to vector<4x1xi32>
    %c4_i32 = arith.constant 4 : i32
    %224 = vector.broadcast %c4_i32 : i32 to vector<4x8xi32>
    %225 = arith.cmpi eq, %5, %224 : vector<4x8xi32>
    %226 = vector.shape_cast %223 : vector<4x1xi32> to vector<4x1xi32>
    %227 = vector.broadcast %226 : vector<4x1xi32> to vector<4x8xi32>
    %228 = arith.select %225, %227, %175 : vector<4x8xi1>, vector<4x8xi32>
    %229 = vector.broadcast %223 : vector<4x1xi32> to vector<4x32xi32>
    %230 = arith.cmpi eq, %229, %4 : vector<4x32xi32>
    %231 = arith.extui %230 : vector<4x32xi1> to vector<4x32xi32>
    %232 = arith.sitofp %231 : vector<4x32xi32> to vector<4x32xf32>
    %c4_75 = arith.constant 4 : index
    %233 = memref.load %arg0[%c4_75] : memref<8xi32, #tpu.memory_space<smem>>
    %c0_i32_76 = arith.constant 0 : i32
    %234 = arith.cmpi sgt, %233, %c0_i32_76 : i32
    %c4_77 = arith.constant 4 : index
    %c0_78 = arith.constant 0 : index
    %c0_79 = arith.constant 0 : index
    %235 = vector.load %arg2[%c4_77, %c0_78, %c0_79] : memref<8x4x32xf32, #tpu.memory_space<vmem>>, vector<1x4x32xf32>
    %236 = vector.shape_cast %235 : vector<1x4x32xf32> to vector<4x32xf32>
    %237 = arith.select %234, %236, %232 : vector<4x32xf32>
    %238 = tpu.concatenate %237, %209 in 1 : vector<4x32xf32>, vector<4x32xf32> -> vector<4x64xf32>
    %cst_80 = arith.constant dense<0.000000e+00> : vector<4x128xf32>
    %239 = tpu.matmul %238, %1, %cst_80 {dimension_numbers = #tpu.dot_dimension_numbers<[1], [0], [0], [1], [0, 0, 1, 1], [], []>} : vector<4x64xf32>, vector<64x128xf32>, vector<4x128xf32> -> vector<4x128xf32>
    %240 = arith.addf %239, %10 : vector<4x128xf32>
    %241 = vector.extract_strided_slice %240 {offsets = [0, 0], sizes = [4, 32], strides = [1, 1]} : vector<4x128xf32> to vector<4x32xf32>
    %242 = arith.negf %241 : vector<4x32xf32>
    %243 = math.exp %242 : vector<4x32xf32>
    %cst_81 = arith.constant 1.000000e+00 : f32
    %244 = vector.broadcast %cst_81 : f32 to vector<4x32xf32>
    %245 = arith.addf %244, %243 : vector<4x32xf32>
    %246 = arith.divf %244, %245 : vector<4x32xf32>
    %247 = vector.extract_strided_slice %240 {offsets = [0, 32], sizes = [4, 32], strides = [1, 1]} : vector<4x128xf32> to vector<4x32xf32>
    %248 = arith.negf %247 : vector<4x32xf32>
    %249 = math.exp %248 : vector<4x32xf32>
    %cst_82 = arith.constant 1.000000e+00 : f32
    %250 = vector.broadcast %cst_82 : f32 to vector<4x32xf32>
    %251 = arith.addf %250, %249 : vector<4x32xf32>
    %252 = arith.divf %250, %251 : vector<4x32xf32>
    %253 = vector.extract_strided_slice %240 {offsets = [0, 64], sizes = [4, 32], strides = [1, 1]} : vector<4x128xf32> to vector<4x32xf32>
    %254 = vector.extract_strided_slice %240 {offsets = [0, 96], sizes = [4, 32], strides = [1, 1]} : vector<4x128xf32> to vector<4x32xf32>
    %255 = arith.mulf %246, %254 : vector<4x32xf32>
    %256 = arith.addf %253, %255 : vector<4x32xf32>
    %257 = math.tanh %256 : vector<4x32xf32>
    %cst_83 = arith.constant 1.000000e+00 : f32
    %258 = vector.broadcast %cst_83 : f32 to vector<4x32xf32>
    %259 = arith.subf %258, %252 : vector<4x32xf32>
    %260 = arith.mulf %259, %257 : vector<4x32xf32>
    %261 = arith.mulf %252, %209 : vector<4x32xf32>
    %262 = arith.addf %260, %261 : vector<4x32xf32>
    %cst_84 = arith.constant dense<0.000000e+00> : vector<4x32xf32>
    %263 = tpu.matmul %262, %2, %cst_84 {dimension_numbers = #tpu.dot_dimension_numbers<[1], [0], [0], [1], [0, 0, 1, 1], [], []>} : vector<4x32xf32>, vector<32x32xf32>, vector<4x32xf32> -> vector<4x32xf32>
    %264 = vector.broadcast %3 : vector<1x32xf32> to vector<4x32xf32>
    %265 = arith.addf %263, %264 : vector<4x32xf32>
    %c5 = arith.constant 5 : index
    %c0_85 = arith.constant 0 : index
    %c0_86 = arith.constant 0 : index
    %266 = vector.load %arg10[%c5, %c0_85, %c0_86] : memref<8x4x32xf32, #tpu.memory_space<vmem>>, vector<1x4x32xf32>
    %267 = vector.shape_cast %266 : vector<1x4x32xf32> to vector<4x32xf32>
    %268 = vector.shape_cast %265 : vector<4x32xf32> to vector<1x4x32xf32>
    tpu.vector_store %arg10[%c5, %c0_85, %c0_86], %268 {strides = array<i32>} : memref<8x4x32xf32, #tpu.memory_space<vmem>>, vector<1x4x32xf32>,
    %cst_87 = arith.constant dense<0xFF800000> : vector<4xf32>
    %269 = vector.multi_reduction <maximumf>, %265, %cst_87 [1] : vector<4x32xf32> to vector<4xf32>
    %270 = vector.shape_cast %269 : vector<4xf32> to vector<4x1xf32>
    %271 = vector.broadcast %270 : vector<4x1xf32> to vector<4x32xf32>
    %272 = arith.cmpf oeq, %265, %271 : vector<4x32xf32>
    %c32_i32_88 = arith.constant 32 : i32
    %273 = vector.broadcast %c32_i32_88 : i32 to vector<4x32xi32>
    %274 = arith.select %272, %4, %273 : vector<4x32xi1>, vector<4x32xi32>
    %cst_89 = arith.constant dense<2147483647> : vector<4xi32>
    %275 = vector.multi_reduction <minsi>, %274, %cst_89 [1] : vector<4x32xi32> to vector<4xi32>
    %276 = vector.shape_cast %275 : vector<4xi32> to vector<4x1xi32>
    %c5_i32 = arith.constant 5 : i32
    %277 = vector.broadcast %c5_i32 : i32 to vector<4x8xi32>
    %278 = arith.cmpi eq, %5, %277 : vector<4x8xi32>
    %279 = vector.shape_cast %276 : vector<4x1xi32> to vector<4x1xi32>
    %280 = vector.broadcast %279 : vector<4x1xi32> to vector<4x8xi32>
    %281 = arith.select %278, %280, %228 : vector<4x8xi1>, vector<4x8xi32>
    %282 = vector.broadcast %276 : vector<4x1xi32> to vector<4x32xi32>
    %283 = arith.cmpi eq, %282, %4 : vector<4x32xi32>
    %284 = arith.extui %283 : vector<4x32xi1> to vector<4x32xi32>
    %285 = arith.sitofp %284 : vector<4x32xi32> to vector<4x32xf32>
    %c5_90 = arith.constant 5 : index
    %286 = memref.load %arg0[%c5_90] : memref<8xi32, #tpu.memory_space<smem>>
    %c0_i32_91 = arith.constant 0 : i32
    %287 = arith.cmpi sgt, %286, %c0_i32_91 : i32
    %c5_92 = arith.constant 5 : index
    %c0_93 = arith.constant 0 : index
    %c0_94 = arith.constant 0 : index
    %288 = vector.load %arg2[%c5_92, %c0_93, %c0_94] : memref<8x4x32xf32, #tpu.memory_space<vmem>>, vector<1x4x32xf32>
    %289 = vector.shape_cast %288 : vector<1x4x32xf32> to vector<4x32xf32>
    %290 = arith.select %287, %289, %285 : vector<4x32xf32>
    %291 = tpu.concatenate %290, %262 in 1 : vector<4x32xf32>, vector<4x32xf32> -> vector<4x64xf32>
    %cst_95 = arith.constant dense<0.000000e+00> : vector<4x128xf32>
    %292 = tpu.matmul %291, %1, %cst_95 {dimension_numbers = #tpu.dot_dimension_numbers<[1], [0], [0], [1], [0, 0, 1, 1], [], []>} : vector<4x64xf32>, vector<64x128xf32>, vector<4x128xf32> -> vector<4x128xf32>
    %293 = arith.addf %292, %10 : vector<4x128xf32>
    %294 = vector.extract_strided_slice %293 {offsets = [0, 0], sizes = [4, 32], strides = [1, 1]} : vector<4x128xf32> to vector<4x32xf32>
    %295 = arith.negf %294 : vector<4x32xf32>
    %296 = math.exp %295 : vector<4x32xf32>
    %cst_96 = arith.constant 1.000000e+00 : f32
    %297 = vector.broadcast %cst_96 : f32 to vector<4x32xf32>
    %298 = arith.addf %297, %296 : vector<4x32xf32>
    %299 = arith.divf %297, %298 : vector<4x32xf32>
    %300 = vector.extract_strided_slice %293 {offsets = [0, 32], sizes = [4, 32], strides = [1, 1]} : vector<4x128xf32> to vector<4x32xf32>
    %301 = arith.negf %300 : vector<4x32xf32>
    %302 = math.exp %301 : vector<4x32xf32>
    %cst_97 = arith.constant 1.000000e+00 : f32
    %303 = vector.broadcast %cst_97 : f32 to vector<4x32xf32>
    %304 = arith.addf %303, %302 : vector<4x32xf32>
    %305 = arith.divf %303, %304 : vector<4x32xf32>
    %306 = vector.extract_strided_slice %293 {offsets = [0, 64], sizes = [4, 32], strides = [1, 1]} : vector<4x128xf32> to vector<4x32xf32>
    %307 = vector.extract_strided_slice %293 {offsets = [0, 96], sizes = [4, 32], strides = [1, 1]} : vector<4x128xf32> to vector<4x32xf32>
    %308 = arith.mulf %299, %307 : vector<4x32xf32>
    %309 = arith.addf %306, %308 : vector<4x32xf32>
    %310 = math.tanh %309 : vector<4x32xf32>
    %cst_98 = arith.constant 1.000000e+00 : f32
    %311 = vector.broadcast %cst_98 : f32 to vector<4x32xf32>
    %312 = arith.subf %311, %305 : vector<4x32xf32>
    %313 = arith.mulf %312, %310 : vector<4x32xf32>
    %314 = arith.mulf %305, %262 : vector<4x32xf32>
    %315 = arith.addf %313, %314 : vector<4x32xf32>
    %cst_99 = arith.constant dense<0.000000e+00> : vector<4x32xf32>
    %316 = tpu.matmul %315, %2, %cst_99 {dimension_numbers = #tpu.dot_dimension_numbers<[1], [0], [0], [1], [0, 0, 1, 1], [], []>} : vector<4x32xf32>, vector<32x32xf32>, vector<4x32xf32> -> vector<4x32xf32>
    %317 = vector.broadcast %3 : vector<1x32xf32> to vector<4x32xf32>
    %318 = arith.addf %316, %317 : vector<4x32xf32>
    %c6 = arith.constant 6 : index
    %c0_100 = arith.constant 0 : index
    %c0_101 = arith.constant 0 : index
    %319 = vector.load %arg10[%c6, %c0_100, %c0_101] : memref<8x4x32xf32, #tpu.memory_space<vmem>>, vector<1x4x32xf32>
    %320 = vector.shape_cast %319 : vector<1x4x32xf32> to vector<4x32xf32>
    %321 = vector.shape_cast %318 : vector<4x32xf32> to vector<1x4x32xf32>
    tpu.vector_store %arg10[%c6, %c0_100, %c0_101], %321 {strides = array<i32>} : memref<8x4x32xf32, #tpu.memory_space<vmem>>, vector<1x4x32xf32>,
    %cst_102 = arith.constant dense<0xFF800000> : vector<4xf32>
    %322 = vector.multi_reduction <maximumf>, %318, %cst_102 [1] : vector<4x32xf32> to vector<4xf32>
    %323 = vector.shape_cast %322 : vector<4xf32> to vector<4x1xf32>
    %324 = vector.broadcast %323 : vector<4x1xf32> to vector<4x32xf32>
    %325 = arith.cmpf oeq, %318, %324 : vector<4x32xf32>
    %c32_i32_103 = arith.constant 32 : i32
    %326 = vector.broadcast %c32_i32_103 : i32 to vector<4x32xi32>
    %327 = arith.select %325, %4, %326 : vector<4x32xi1>, vector<4x32xi32>
    %cst_104 = arith.constant dense<2147483647> : vector<4xi32>
    %328 = vector.multi_reduction <minsi>, %327, %cst_104 [1] : vector<4x32xi32> to vector<4xi32>
    %329 = vector.shape_cast %328 : vector<4xi32> to vector<4x1xi32>
    %c6_i32 = arith.constant 6 : i32
    %330 = vector.broadcast %c6_i32 : i32 to vector<4x8xi32>
    %331 = arith.cmpi eq, %5, %330 : vector<4x8xi32>
    %332 = vector.shape_cast %329 : vector<4x1xi32> to vector<4x1xi32>
    %333 = vector.broadcast %332 : vector<4x1xi32> to vector<4x8xi32>
    %334 = arith.select %331, %333, %281 : vector<4x8xi1>, vector<4x8xi32>
    %335 = vector.broadcast %329 : vector<4x1xi32> to vector<4x32xi32>
    %336 = arith.cmpi eq, %335, %4 : vector<4x32xi32>
    %337 = arith.extui %336 : vector<4x32xi1> to vector<4x32xi32>
    %338 = arith.sitofp %337 : vector<4x32xi32> to vector<4x32xf32>
    %c6_105 = arith.constant 6 : index
    %339 = memref.load %arg0[%c6_105] : memref<8xi32, #tpu.memory_space<smem>>
    %c0_i32_106 = arith.constant 0 : i32
    %340 = arith.cmpi sgt, %339, %c0_i32_106 : i32
    %c6_107 = arith.constant 6 : index
    %c0_108 = arith.constant 0 : index
    %c0_109 = arith.constant 0 : index
    %341 = vector.load %arg2[%c6_107, %c0_108, %c0_109] : memref<8x4x32xf32, #tpu.memory_space<vmem>>, vector<1x4x32xf32>
    %342 = vector.shape_cast %341 : vector<1x4x32xf32> to vector<4x32xf32>
    %343 = arith.select %340, %342, %338 : vector<4x32xf32>
    %344 = tpu.concatenate %343, %315 in 1 : vector<4x32xf32>, vector<4x32xf32> -> vector<4x64xf32>
    %cst_110 = arith.constant dense<0.000000e+00> : vector<4x128xf32>
    %345 = tpu.matmul %344, %1, %cst_110 {dimension_numbers = #tpu.dot_dimension_numbers<[1], [0], [0], [1], [0, 0, 1, 1], [], []>} : vector<4x64xf32>, vector<64x128xf32>, vector<4x128xf32> -> vector<4x128xf32>
    %346 = arith.addf %345, %10 : vector<4x128xf32>
    %347 = vector.extract_strided_slice %346 {offsets = [0, 0], sizes = [4, 32], strides = [1, 1]} : vector<4x128xf32> to vector<4x32xf32>
    %348 = arith.negf %347 : vector<4x32xf32>
    %349 = math.exp %348 : vector<4x32xf32>
    %cst_111 = arith.constant 1.000000e+00 : f32
    %350 = vector.broadcast %cst_111 : f32 to vector<4x32xf32>
    %351 = arith.addf %350, %349 : vector<4x32xf32>
    %352 = arith.divf %350, %351 : vector<4x32xf32>
    %353 = vector.extract_strided_slice %346 {offsets = [0, 32], sizes = [4, 32], strides = [1, 1]} : vector<4x128xf32> to vector<4x32xf32>
    %354 = arith.negf %353 : vector<4x32xf32>
    %355 = math.exp %354 : vector<4x32xf32>
    %cst_112 = arith.constant 1.000000e+00 : f32
    %356 = vector.broadcast %cst_112 : f32 to vector<4x32xf32>
    %357 = arith.addf %356, %355 : vector<4x32xf32>
    %358 = arith.divf %356, %357 : vector<4x32xf32>
    %359 = vector.extract_strided_slice %346 {offsets = [0, 64], sizes = [4, 32], strides = [1, 1]} : vector<4x128xf32> to vector<4x32xf32>
    %360 = vector.extract_strided_slice %346 {offsets = [0, 96], sizes = [4, 32], strides = [1, 1]} : vector<4x128xf32> to vector<4x32xf32>
    %361 = arith.mulf %352, %360 : vector<4x32xf32>
    %362 = arith.addf %359, %361 : vector<4x32xf32>
    %363 = math.tanh %362 : vector<4x32xf32>
    %cst_113 = arith.constant 1.000000e+00 : f32
    %364 = vector.broadcast %cst_113 : f32 to vector<4x32xf32>
    %365 = arith.subf %364, %358 : vector<4x32xf32>
    %366 = arith.mulf %365, %363 : vector<4x32xf32>
    %367 = arith.mulf %358, %315 : vector<4x32xf32>
    %368 = arith.addf %366, %367 : vector<4x32xf32>
    %cst_114 = arith.constant dense<0.000000e+00> : vector<4x32xf32>
    %369 = tpu.matmul %368, %2, %cst_114 {dimension_numbers = #tpu.dot_dimension_numbers<[1], [0], [0], [1], [0, 0, 1, 1], [], []>} : vector<4x32xf32>, vector<32x32xf32>, vector<4x32xf32> -> vector<4x32xf32>
    %370 = vector.broadcast %3 : vector<1x32xf32> to vector<4x32xf32>
    %371 = arith.addf %369, %370 : vector<4x32xf32>
    %c7 = arith.constant 7 : index
    %c0_115 = arith.constant 0 : index
    %c0_116 = arith.constant 0 : index
    %372 = vector.load %arg10[%c7, %c0_115, %c0_116] : memref<8x4x32xf32, #tpu.memory_space<vmem>>, vector<1x4x32xf32>
    %373 = vector.shape_cast %372 : vector<1x4x32xf32> to vector<4x32xf32>
    %374 = vector.shape_cast %371 : vector<4x32xf32> to vector<1x4x32xf32>
    tpu.vector_store %arg10[%c7, %c0_115, %c0_116], %374 {strides = array<i32>} : memref<8x4x32xf32, #tpu.memory_space<vmem>>, vector<1x4x32xf32>,
    %cst_117 = arith.constant dense<0xFF800000> : vector<4xf32>
    %375 = vector.multi_reduction <maximumf>, %371, %cst_117 [1] : vector<4x32xf32> to vector<4xf32>
    %376 = vector.shape_cast %375 : vector<4xf32> to vector<4x1xf32>
    %377 = vector.broadcast %376 : vector<4x1xf32> to vector<4x32xf32>
    %378 = arith.cmpf oeq, %371, %377 : vector<4x32xf32>
    %c32_i32_118 = arith.constant 32 : i32
    %379 = vector.broadcast %c32_i32_118 : i32 to vector<4x32xi32>
    %380 = arith.select %378, %4, %379 : vector<4x32xi1>, vector<4x32xi32>
    %cst_119 = arith.constant dense<2147483647> : vector<4xi32>
    %381 = vector.multi_reduction <minsi>, %380, %cst_119 [1] : vector<4x32xi32> to vector<4xi32>
    %382 = vector.shape_cast %381 : vector<4xi32> to vector<4x1xi32>
    %c7_i32 = arith.constant 7 : i32
    %383 = vector.broadcast %c7_i32 : i32 to vector<4x8xi32>
    %384 = arith.cmpi eq, %5, %383 : vector<4x8xi32>
    %385 = vector.shape_cast %382 : vector<4x1xi32> to vector<4x1xi32>
    %386 = vector.broadcast %385 : vector<4x1xi32> to vector<4x8xi32>
    %387 = arith.select %384, %386, %334 : vector<4x8xi1>, vector<4x8xi32>
    %c0_120 = arith.constant 0 : index
    %c0_121 = arith.constant 0 : index
    %388 = vector.load %arg11[%c0_120, %c0_121] : memref<4x8xi32, #tpu.memory_space<vmem>>, vector<4x8xi32>
    tpu.vector_store %arg11[%c0_120, %c0_121], %387 {strides = array<i32>} : memref<4x8xi32, #tpu.memory_space<vmem>>, vector<4x8xi32>,
    return
  }
}

</mosaic_0001>

<llo_original>
// kernel: rollout_decoder_forward.1
$region0: #{rollout_decoder_forward.1}
  #allocation0 [shape = 'u32[]', space=smem, size = 0x4, offset = 0x4, fixed_abs, tag = 'smem constant byte address 0x4 - core index']
  #allocation1 [shape = 'u32[72,128]{1,0:T(1,128)}', space=vmem, size = 0x9000, scoped, tag = 'internal scratch']
  %s0 = inlined_call_operand.vmem [shape: s32[8], index: 0, kind: input, shape index: {}]
  %s1 = inlined_call_operand.vmem [shape: f32[4,24], index: 1, kind: input, shape index: {}]
  %s2 = inlined_call_operand.vmem [shape: f32[8,4,32], index: 2, kind: input, shape index: {}]
  %s3 = inlined_call_operand.vmem [shape: f32[24,32], index: 3, kind: input, shape index: {}]
  %s4 = inlined_call_operand.vmem [shape: f32[1,32], index: 4, kind: input, shape index: {}]
  %s5 = inlined_call_operand.vmem [shape: f32[64,128], index: 5, kind: input, shape index: {}]
  %s6 = inlined_call_operand.vmem [shape: f32[24,128], index: 6, kind: input, shape index: {}]
  %s7 = inlined_call_operand.vmem [shape: f32[1,128], index: 7, kind: input, shape index: {}]
  %s8 = inlined_call_operand.vmem [shape: f32[32,32], index: 8, kind: input, shape index: {}]
  %s9 = inlined_call_operand.vmem [shape: f32[1,32], index: 9, kind: input, shape index: {}]
  %s10 = inlined_call_operand.hbm [shape: f32[8,4,32], index: 10, kind: output, shape index: {0}]
  %s11 = inlined_call_operand.hbm [shape: s32[4,8], index: 11, kind: output, shape index: {1}]
  %12 = xla_tuple %s10, %s11
  %s13 = sld [smem:[#allocation0]]
  $region62: #{rollout_decoder_forward.1} parent=0
    _
  %s15 = ssub.s32 1, %s13
  %s16 = scalar_select 0, %s15, %s13
  $region1: #{rollout_decoder_forward.1} parent=0
    #allocation2 [shape = 'u8[512]{0}', space=smem, size = 0x200, scoped, tag = 'input window, operand 0, single buffered']
    #allocation3 [shape = 's32[1]{0}', space=sflag, size = 0x4, scoped, tag = 'scoped memory for rollout_decoder_forward.1']
    #allocation4 [shape = 's32[1]{0}', space=sflag, size = 0x4, scoped, tag = 'scoped memory for rollout_decoder_forward.1']
    #allocation5 [shape = 'u8[16384]{0}', space=vmem, size = 0x4000, scoped, tag = 'output window, operand 0, single buffered']
    #allocation6 [shape = 'u8[2048]{0}', space=vmem, size = 0x800, scoped, tag = 'output window, operand 1, single buffered']
    #allocation7 [shape = 's32[1]{0}', space=sflag, size = 0x4, scoped, tag = 'scoped memory for rollout_decoder_forward.1']
    %17 = vsyncpa [#allocation4], 0
    %18 = vsyncpa [#allocation3], 0
    %19 = vsyncpa [#allocation7], 0
    // Predicated region
    $region2: #{rollout_decoder_forward.1} parent=1 // pred_check
      _
    $region3: #{rollout_decoder_forward.1} parent=1 // pred_check_branch
      %21 = sbr.rel (0) target = $region5
    $region4: #{rollout_decoder_forward.1} parent=1 // pred_region
      %23 = vsyncadd [#allocation4], 0
      %s25 = sshll.u32 %s0, 4
      %s26 = int_to_ptr.vmem [resolvable:$true] %s25
      %28 = dma.vmem_to_smem %s26, 16, [#allocation2], [#allocation4]
    $region5: #{rollout_decoder_forward.1} parent=1 // pred_fallthru
      _
    // Predicated region
    $region6: #{rollout_decoder_forward.1} parent=1 // pred_check
      _
    $region7: #{rollout_decoder_forward.1} parent=1 // pred_check_branch
      %30 = sbr.rel (0) target = $region9
    $region8: #{rollout_decoder_forward.1} parent=1 // pred_region
      _
    $region9: #{rollout_decoder_forward.1} parent=1 // pred_fallthru
      _
    // Predicated region
    $region10: #{rollout_decoder_forward.1} parent=1 // pred_check
      _
    $region11: #{rollout_decoder_forward.1} parent=1 // pred_check_branch
      %32 = sbr.rel (0) target = $region13
    $region12: #{rollout_decoder_forward.1} parent=1 // pred_region
      _
    $region13: #{rollout_decoder_forward.1} parent=1 // pred_fallthru
      _
    // Predicated region
    $region14: #{rollout_decoder_forward.1} parent=1 // pred_check
      _
    $region15: #{rollout_decoder_forward.1} parent=1 // pred_check_branch
      %34 = sbr.rel (0) target = $region17
    $region16: #{rollout_decoder_forward.1} parent=1 // pred_region
      _
    $region17: #{rollout_decoder_forward.1} parent=1 // pred_fallthru
      _
    // Predicated region
    $region18: #{rollout_decoder_forward.1} parent=1 // pred_check
      _
    $region19: #{rollout_decoder_forward.1} parent=1 // pred_check_branch
      %36 = sbr.rel (0) target = $region21
    $region20: #{rollout_decoder_forward.1} parent=1 // pred_region
      _
    $region21: #{rollout_decoder_forward.1} parent=1 // pred_fallthru
      _
    // Predicated region
    $region22: #{rollout_decoder_forward.1} parent=1 // pred_check
      _
    $region23: #{rollout_decoder_forward.1} parent=1 // pred_check_branch
      %38 = sbr.rel (0) target = $region25
    $region24: #{rollout_decoder_forward.1} parent=1 // pred_region
      _
    $region25: #{rollout_decoder_forward.1} parent=1 // pred_fallthru
      _
    // Predicated region
    $region26: #{rollout_decoder_forward.1} parent=1 // pred_check
      _
    $region27: #{rollout_decoder_forward.1} parent=1 // pred_check_branch
      %40 = sbr.rel (0) target = $region29
    $region28: #{rollout_decoder_forward.1} parent=1 // pred_region
      _
    $region29: #{rollout_decoder_forward.1} parent=1 // pred_fallthru
      _
    // Predicated region
    $region30: #{rollout_decoder_forward.1} parent=1 // pred_check
      _
    $region31: #{rollout_decoder_forward.1} parent=1 // pred_check_branch
      %42 = sbr.rel (0) target = $region33
    $region32: #{rollout_decoder_forward.1} parent=1 // pred_region
      _
    $region33: #{rollout_decoder_forward.1} parent=1 // pred_fallthru
      _
    // Predicated region
    $region34: #{rollout_decoder_forward.1} parent=1 // pred_check
      _
    $region35: #{rollout_decoder_forward.1} parent=1 // pred_check_branch
      %44 = sbr.rel (0) target = $region37
    $region36: #{rollout_decoder_forward.1} parent=1 // pred_region
      _
    $region37: #{rollout_decoder_forward.1} parent=1 // pred_fallthru
      _
    // Predicated region
    $region38: #{rollout_decoder_forward.1} parent=1 // pred_check
      _
    $region39: #{rollout_decoder_forward.1} parent=1 // pred_check_branch
      %46 = sbr.rel (0) target = $region41
    $region40: #{rollout_decoder_forward.1} parent=1 // pred_region
      _
    $region41: #{rollout_decoder_forward.1} parent=1 // pred_fallthru
      _
    // Predicated region
    $region42: #{rollout_decoder_forward.1} parent=1 // pred_check
      _
    $region43: #{rollout_decoder_forward.1} parent=1 // pred_check_branch
      %48 = sbr.rel (0) target = $region45
    $region44: #{rollout_decoder_forward.1} parent=1 // pred_region
      %50 = dma.done [#allocation4], 16
    $region45: #{rollout_decoder_forward.1} parent=1 // pred_fallthru
      _
    %51 = sfence
    %v52 = vld [vmem:[%s1] sm:$0xf]
    %v53 = vld [vmem:[%s5] sm:$0xff]
    %v54 = vld [vmem:[%s5 + $0x8] sm:$0xff]
    %v55 = vld [vmem:[%s5 + $0x10] sm:$0xff]
    %v56 = vld [vmem:[%s5 + $0x18] sm:$0xff]
    %v57 = vld [vmem:[%s5 + $0x20] sm:$0xff]
    %v58 = vld [vmem:[%s5 + $0x28] sm:$0xff]
    %v59 = vld [vmem:[%s5 + $0x30] sm:$0xff]
    %v60 = vld [vmem:[%s5 + $0x38] sm:$0xff]
    %v61 = vld [vmem:[%s8] sm:$0xff]
    %v62 = vld [vmem:[%s8 + $0x8] sm:$0xff]
    %v63 = vld [vmem:[%s8 + $0x10] sm:$0xff]
    %v64 = vld [vmem:[%s8 + $0x18] sm:$0xff]
    %v65 = vld [vmem:[%s9] sm:$0x1]
    %v66 = vlaneseq
    %v67 = vand.u32 %v66, 127
    %v68 = vld [vmem:[%s6] sm:$0xff]
    %v69 = vld [vmem:[%s6 + $0x8] sm:$0xff]
    %v70 = vld [vmem:[%s6 + $0x10] sm:$0xff]
    %v71 = vld [vmem:[%s7] sm:$0x1]
    %v73 = vperm.slane %v71, 0
    %vm75 = vcmask 195584
    %v77 = vsel %vm75, %v52, 0
    %79 = vmatpush.msra.mxu0 0.0
    %80 = vmatpush.msra.mxu0 0.0
    %81 = vmatpush.msra.mxu0 0.0
    %82 = vmatpush.msra.mxu0 0.0
    %83 = vmatpush.msra.mxu0 0.0
    %84 = vmatpush.msra.mxu0 0.0
    %85 = vmatpush.msra.mxu0 0.0
    %86 = vmatpush.msra.mxu0 0.0
    %87 = vmatpush.msra.mxu0 0.0
    %88 = vmatpush.msra.mxu0 0.0
    %89 = vmatpush.msra.mxu0 0.0
    %90 = vmatpush.msra.mxu0 0.0
    %91 = vmatpush.msra.mxu0 0.0
    %92 = vmatpush.msra.mxu0 %v70
    %93 = vmatpush.msra.mxu0 %v69
    %94 = vmatpush.msra.mxu0 %v68
    %95 = vmatmul.f32.gmra.mxu0 %v77
    %v96 = vpop.f32.mrf.mxu0
    %v97 = vadd.f32 %v73, %v96
    %98 = vdwg.mxu0
    %v99 = vld [vmem:[%s3] sm:$0xff]
    %v100 = vld [vmem:[%s3 + $0x8] sm:$0xff]
    %v101 = vld [vmem:[%s3 + $0x10] sm:$0xff]
    %v102 = vld [vmem:[%s4] sm:$0x1]
    %v104 = vperm.slane %v102, 0
    %106 = vmatpush.msra.mxu0 0.0
    %107 = vmatpush.msra.mxu0 0.0
    %108 = vmatpush.msra.mxu0 0.0
    %109 = vmatpush.msra.mxu0 0.0
    %110 = vmatpush.msra.mxu0 0.0
    %111 = vmatpush.msra.mxu0 0.0
    %112 = vmatpush.msra.mxu0 0.0
    %113 = vmatpush.msra.mxu0 0.0
    %114 = vmatpush.msra.mxu0 0.0
    %115 = vmatpush.msra.mxu0 0.0
    %116 = vmatpush.msra.mxu0 0.0
    %117 = vmatpush.msra.mxu0 0.0
    %118 = vmatpush.msra.mxu0 0.0
    %119 = vmatpush.msra.mxu0 %v101
    %120 = vmatpush.msra.mxu0 %v100
    %121 = vmatpush.msra.mxu0 %v99
    %122 = vmatmul.f32.gmra.mxu0 %v77
    %v123 = vpop.f32.mrf.mxu0
    %v124 = vadd.f32 %v104, %v123
    %125 = vdwg.mxu0
    %v126 = vtanh.pop %v124
    %vm127 = vcmp.eq.s32.totalorder %v67, 1
    %v128 = vsel %vm127, 1, 0
    %v129 = vcvt.s32.f32 %v128
    %vm130 = vcmask 257024
    %131 = vst.msk [vmem:[#allocation5] sm:$0xf] %vm130, 0.0
    %133 = vrot.lane.b32.xlu0 %v126, 32
    %v134 = vpop.permute.xlu0 %133
    %vm136 = vcmask 261120
    %v137 = vsel %vm136, %v129, %v134
    %vm138 = vcmask 523264
    %v140 = vsel %vm138, %v137, 0
    %142 = vmatpush.msra.mxu0 0.0
    %143 = vmatpush.msra.mxu0 0.0
    %144 = vmatpush.msra.mxu0 0.0
    %145 = vmatpush.msra.mxu0 0.0
    %146 = vmatpush.msra.mxu0 0.0
    %147 = vmatpush.msra.mxu0 0.0
    %148 = vmatpush.msra.mxu0 0.0
    %149 = vmatpush.msra.mxu0 0.0
    %150 = vmatpush.msra.mxu0 %v60
    %151 = vmatpush.msra.mxu0 %v59
    %152 = vmatpush.msra.mxu0 %v58
    %153 = vmatpush.msra.mxu0 %v57
    %154 = vmatpush.msra.mxu0 %v56
    %155 = vmatpush.msra.mxu0 %v55
    %156 = vmatpush.msra.mxu0 %v54
    %157 = vmatpush.msra.mxu0 %v53
    %158 = vmatmul.f32.gmra.mxu0 %v140
    %v159 = vpop.f32.mrf.mxu0
    %v160 = vadd.f32 %v97, %v159
    %161 = vdwg.mxu0
    %v162 = vxor.u32 %v160, 2147483648
    %v163 = vmul.f32 %v162, 1.442695
    %v164 = vpow.pop %v163
    %v165 = vadd.f32 %v164, 1.0
    %v166 = vrcp.pop %v165
    %v167 = vmul.f32 %v165, %v166
    %v168 = vsub.f32 1.0, %v167
    %v169 = vmul.f32 %v166, %v168
    %v170 = vadd.f32 %v166, %v169
    %vm171 = vweird.f32 %v165
    %vm172 = vweird.f32 %v166
    %vm173 = vmor %vm171, %vm172
    %v174 = vsel %vm173, %v166, %v170
    %v175 = vand.u32 2147483647, %v165
    %vm176 = vcmp.eq.f32.partialorder %v175, 8.507059e+37
    %v177 = vand.u32 %v165, 2147483648
    %v178 = vor.u32 1.1754944e-38, %v177
    %v179 = vsel %vm176, %v178, %v174
    %v180 = vmul.f32 1.0, %v179
    %182 = vrot.lane.b32.xlu0 %v160, 32
    %v183 = vpop.permute.xlu0 %182
    %v185 = vmul.f32 %v180, %v183
    %187 = vrot.lane.b32.xlu0 %v185, 64
    %v188 = vpop.permute.xlu0 %187
    %v190 = vadd.f32 %v160, %v188
    %v191 = vtanh.pop %v190
    %v192 = vsub.f32 1.0, %v180
    %194 = vrot.lane.b32.xlu0 %v191, 96
    %v195 = vpop.permute.xlu0 %194
    %v197 = vmul.f32 %v192, %v195
    %v198 = vmul.f32 %v180, %v134
    %v199 = vadd.f32 %v197, %v198
    %v201 = vperm.slane %v65, 0
    %204 = vrot.lane.b32.xlu0 %v199, 96
    %v205 = vpop.permute.xlu0 %204
    %v206 = vsel %vm136, %v205, 0
    %208 = vmatpush.msra.mxu0 0.0
    %209 = vmatpush.msra.mxu0 0.0
    %210 = vmatpush.msra.mxu0 0.0
    %211 = vmatpush.msra.mxu0 0.0
    %212 = vmatpush.msra.mxu0 0.0
    %213 = vmatpush.msra.mxu0 0.0
    %214 = vmatpush.msra.mxu0 0.0
    %215 = vmatpush.msra.mxu0 0.0
    %216 = vmatpush.msra.mxu0 0.0
    %217 = vmatpush.msra.mxu0 0.0
    %218 = vmatpush.msra.mxu0 0.0
    %219 = vmatpush.msra.mxu0 0.0
    %220 = vmatpush.msra.mxu0 %v64
    %221 = vmatpush.msra.mxu0 %v63
    %222 = vmatpush.msra.mxu0 %v62
    %223 = vmatpush.msra.mxu0 %v61
    %224 = vmatmul.f32.gmra.mxu0 %v206
    %v225 = vpop.f32.mrf.mxu0
    %v226 = vadd.f32 %v201, %v225
    %227 = vdwg.mxu0
    %s228 = scalar_lea.vmem [#allocation5], 4
    %229 = vst.msk [vmem:[%s228] sm:$0xf] %vm130, %v226
    %v230 = vsel %vm130, %v226, -inf
    %231 = vmax.xlane.f32.xlu0 %v230
    %v232 = vpop.xlane.xlu0 %231
    %vm233 = vcmp.eq.f32.partialorder %v226, %v232
    %v234 = vsel %vm233, %v67, 32
    %v235 = vsel %vm130, %v234, 2147483647
    %v236 = vand.u32 %v235, 65535
    %v237 = vshra.s32 %v235, 16
    %v238 = vcvt.s32.f32 %v236
    %v239 = vcvt.s32.f32 %v237
    %240 = vmin.xlane.f32.xlu0 %v239
    %v241 = vpop.xlane.xlu0 %240
    %vm242 = vcmp.eq.f32.partialorder %v239, %v241
    %v243 = vsel %vm242, %v238, inf
    %244 = vmin.xlane.f32.xlu0 %v243
    %v245 = vpop.xlane.xlu0 %244
    %v246 = vcvt.f32.s32 %v245
    %v247 = vcvt.f32.s32 %v241
    %v248 = vshll.u32 %v247, 16
    %v249 = vadd.s32 %v248, %v246
    %v250 = vsel %vm127, %v249, 1
    %vm251 = vcmp.eq.s32.totalorder %v249, %v67
    %v252 = vsel %vm251, 1, 0
    %v253 = vcvt.s32.f32 %v252
    %s254 = sld [smem:[#allocation2 + $0x1]]
    %p255 = scmp.gt.s32.totalorder %s254, 0
    %s256 = scalar_lea.vmem %s2, 4
    %v257 = vld [vmem:[%s256] sm:$0xf]
    %s258 = scalar_select %p255, 1, 0
    %v259 = vstv %s258
    %vm260 = vcmp.eq.s32.totalorder %v259, 1
    %v261 = vsel %vm260, %v257, %v253
    %v262 = vsel %vm136, %v261, %v199
    %v264 = vsel %vm138, %v262, 0
    %266 = vmatpush.msra.mxu0 0.0
    %267 = vmatpush.msra.mxu0 0.0
    %268 = vmatpush.msra.mxu0 0.0
    %269 = vmatpush.msra.mxu0 0.0
    %270 = vmatpush.msra.mxu0 0.0
    %271 = vmatpush.msra.mxu0 0.0
    %272 = vmatpush.msra.mxu0 0.0
    %273 = vmatpush.msra.mxu0 0.0
    %274 = vmatpush.msra.mxu0 %v60
    %275 = vmatpush.msra.mxu0 %v59
    %276 = vmatpush.msra.mxu0 %v58
    %277 = vmatpush.msra.mxu0 %v57
    %278 = vmatpush.msra.mxu0 %v56
    %279 = vmatpush.msra.mxu0 %v55
    %280 = vmatpush.msra.mxu0 %v54
    %281 = vmatpush.msra.mxu0 %v53
    %282 = vmatmul.f32.gmra.mxu0 %v264
    %v283 = vpop.f32.mrf.mxu0
    %v284 = vadd.f32 %v97, %v283
    %285 = vdwg.mxu0
    %v286 = vxor.u32 %v284, 2147483648
    %v287 = vmul.f32 %v286, 1.442695
    %v288 = vpow.pop %v287
    %v289 = vadd.f32 %v288, 1.0
    %v290 = vrcp.pop %v289
    %v291 = vmul.f32 %v289, %v290
    %v292 = vsub.f32 1.0, %v291
    %v293 = vmul.f32 %v290, %v292
    %v294 = vadd.f32 %v290, %v293
    %vm295 = vweird.f32 %v289
    %vm296 = vweird.f32 %v290
    %vm297 = vmor %vm295, %vm296
    %v298 = vsel %vm297, %v290, %v294
    %v299 = vand.u32 2147483647, %v289
    %vm300 = vcmp.eq.f32.partialorder %v299, 8.507059e+37
    %v301 = vand.u32 %v289, 2147483648
    %v302 = vor.u32 1.1754944e-38, %v301
    %v303 = vsel %vm300, %v302, %v298
    %v304 = vmul.f32 1.0, %v303
    %306 = vrot.lane.b32.xlu0 %v284, 32
    %v307 = vpop.permute.xlu0 %306
    %v309 = vmul.f32 %v304, %v307
    %311 = vrot.lane.b32.xlu0 %v309, 64
    %v312 = vpop.permute.xlu0 %311
    %v314 = vadd.f32 %v284, %v312
    %v315 = vtanh.pop %v314
    %v316 = vsub.f32 1.0, %v304
    %318 = vrot.lane.b32.xlu0 %v315, 96
    %v319 = vpop.permute.xlu0 %318
    %v321 = vmul.f32 %v316, %v319
    %v322 = vmul.f32 %v304, %v199
    %v323 = vadd.f32 %v321, %v322
    %325 = vrot.lane.b32.xlu0 %v323, 96
    %v326 = vpop.permute.xlu0 %325
    %v327 = vsel %vm136, %v326, 0
    %329 = vmatpush.msra.mxu0 0.0
    %330 = vmatpush.msra.mxu0 0.0
    %331 = vmatpush.msra.mxu0 0.0
    %332 = vmatpush.msra.mxu0 0.0
    %333 = vmatpush.msra.mxu0 0.0
    %334 = vmatpush.msra.mxu0 0.0
    %335 = vmatpush.msra.mxu0 0.0
    %336 = vmatpush.msra.mxu0 0.0
    %337 = vmatpush.msra.mxu0 0.0
    %338 = vmatpush.msra.mxu0 0.0
    %339 = vmatpush.msra.mxu0 0.0
    %340 = vmatpush.msra.mxu0 0.0
    %341 = vmatpush.msra.mxu0 %v64
    %342 = vmatpush.msra.mxu0 %v63
    %343 = vmatpush.msra.mxu0 %v62
    %344 = vmatpush.msra.mxu0 %v61
    %345 = vmatmul.f32.gmra.mxu0 %v327
    %v346 = vpop.f32.mrf.mxu0
    %v347 = vadd.f32 %v201, %v346
    %348 = vdwg.mxu0
    %s349 = scalar_lea.vmem [#allocation5], 8
    %350 = vst.msk [vmem:[%s349] sm:$0xf] %vm130, %v347
    %v351 = vsel %vm130, %v347, -inf
    %352 = vmax.xlane.f32.xlu0 %v351
    %v353 = vpop.xlane.xlu0 %352
    %vm354 = vcmp.eq.f32.partialorder %v347, %v353
    %v355 = vsel %vm354, %v67, 32
    %v356 = vsel %vm130, %v355, 2147483647
    %v357 = vand.u32 %v356, 65535
    %v358 = vshra.s32 %v356, 16
    %v359 = vcvt.s32.f32 %v357
    %v360 = vcvt.s32.f32 %v358
    %361 = vmin.xlane.f32.xlu0 %v360
    %v362 = vpop.xlane.xlu0 %361
    %vm363 = vcmp.eq.f32.partialorder %v360, %v362
    %v364 = vsel %vm363, %v359, inf
    %365 = vmin.xlane.f32.xlu0 %v364
    %v366 = vpop.xlane.xlu0 %365
    %v367 = vcvt.f32.s32 %v366
    %v368 = vcvt.f32.s32 %v362
    %v369 = vshll.u32 %v368, 16
    %v370 = vadd.s32 %v369, %v367
    %vm371 = vcmp.eq.s32.totalorder %v67, 2
    %v372 = vsel %vm371, %v370, %v250
    %vm373 = vcmp.eq.s32.totalorder %v370, %v67
    %v374 = vsel %vm373, 1, 0
    %v375 = vcvt.s32.f32 %v374
    %s376 = sld [smem:[#allocation2 + $0x2]]
    %p377 = scmp.gt.s32.totalorder %s376, 0
    %s378 = scalar_lea.vmem %s2, 8
    %v379 = vld [vmem:[%s378] sm:$0xf]
    %s380 = scalar_select %p377, 1, 0
    %v381 = vstv %s380
    %vm382 = vcmp.eq.s32.totalorder %v381, 1
    %v383 = vsel %vm382, %v379, %v375
    %v384 = vsel %vm136, %v383, %v323
    %v386 = vsel %vm138, %v384, 0
    %388 = vmatpush.msra.mxu0 0.0
    %389 = vmatpush.msra.mxu0 0.0
    %390 = vmatpush.msra.mxu0 0.0
    %391 = vmatpush.msra.mxu0 0.0
    %392 = vmatpush.msra.mxu0 0.0
    %393 = vmatpush.msra.mxu0 0.0
    %394 = vmatpush.msra.mxu0 0.0
    %395 = vmatpush.msra.mxu0 0.0
    %396 = vmatpush.msra.mxu0 %v60
    %397 = vmatpush.msra.mxu0 %v59
    %398 = vmatpush.msra.mxu0 %v58
    %399 = vmatpush.msra.mxu0 %v57
    %400 = vmatpush.msra.mxu0 %v56
    %401 = vmatpush.msra.mxu0 %v55
    %402 = vmatpush.msra.mxu0 %v54
    %403 = vmatpush.msra.mxu0 %v53
    %404 = vmatmul.f32.gmra.mxu0 %v386
    %v405 = vpop.f32.mrf.mxu0
    %v406 = vadd.f32 %v97, %v405
    %407 = vdwg.mxu0
    %v408 = vxor.u32 %v406, 2147483648
    %v409 = vmul.f32 %v408, 1.442695
    %v410 = vpow.pop %v409
    %v411 = vadd.f32 %v410, 1.0
    %v412 = vrcp.pop %v411
    %v413 = vmul.f32 %v411, %v412
    %v414 = vsub.f32 1.0, %v413
    %v415 = vmul.f32 %v412, %v414
    %v416 = vadd.f32 %v412, %v415
    %vm417 = vweird.f32 %v411
    %vm418 = vweird.f32 %v412
    %vm419 = vmor %vm417, %vm418
    %v420 = vsel %vm419, %v412, %v416
    %v421 = vand.u32 2147483647, %v411
    %vm422 = vcmp.eq.f32.partialorder %v421, 8.507059e+37
    %v423 = vand.u32 %v411, 2147483648
    %v424 = vor.u32 1.1754944e-38, %v423
    %v425 = vsel %vm422, %v424, %v420
    %v426 = vmul.f32 1.0, %v425
    %428 = vrot.lane.b32.xlu0 %v406, 32
    %v429 = vpop.permute.xlu0 %428
    %v431 = vmul.f32 %v426, %v429
    %433 = vrot.lane.b32.xlu0 %v431, 64
    %v434 = vpop.permute.xlu0 %433
    %v436 = vadd.f32 %v406, %v434
    %v437 = vtanh.pop %v436
    %v438 = vsub.f32 1.0, %v426
    %440 = vrot.lane.b32.xlu0 %v437, 96
    %v441 = vpop.permute.xlu0 %440
    %v443 = vmul.f32 %v438, %v441
    %v444 = vmul.f32 %v426, %v323
    %v445 = vadd.f32 %v443, %v444
    %447 = vrot.lane.b32.xlu0 %v445, 96
    %v448 = vpop.permute.xlu0 %447
    %v449 = vsel %vm136, %v448, 0
    %451 = vmatpush.msra.mxu0 0.0
    %452 = vmatpush.msra.mxu0 0.0
    %453 = vmatpush.msra.mxu0 0.0
    %454 = vmatpush.msra.mxu0 0.0
    %455 = vmatpush.msra.mxu0 0.0
    %456 = vmatpush.msra.mxu0 0.0
    %457 = vmatpush.msra.mxu0 0.0
    %458 = vmatpush.msra.mxu0 0.0
    %459 = vmatpush.msra.mxu0 0.0
    %460 = vmatpush.msra.mxu0 0.0
    %461 = vmatpush.msra.mxu0 0.0
    %462 = vmatpush.msra.mxu0 0.0
    %463 = vmatpush.msra.mxu0 %v64
    %464 = vmatpush.msra.mxu0 %v63
    %465 = vmatpush.msra.mxu0 %v62
    %466 = vmatpush.msra.mxu0 %v61
    %467 = vmatmul.f32.gmra.mxu0 %v449
    %v468 = vpop.f32.mrf.mxu0
    %v469 = vadd.f32 %v201, %v468
    %470 = vdwg.mxu0
    %s471 = scalar_lea.vmem [#allocation5], 12
    %472 = vst.msk [vmem:[%s471] sm:$0xf] %vm130, %v469
    %v473 = vsel %vm130, %v469, -inf
    %474 = vmax.xlane.f32.xlu0 %v473
    %v475 = vpop.xlane.xlu0 %474
    %vm476 = vcmp.eq.f32.partialorder %v469, %v475
    %v477 = vsel %vm476, %v67, 32
    %v478 = vsel %vm130, %v477, 2147483647
    %v479 = vand.u32 %v478, 65535
    %v480 = vshra.s32 %v478, 16
    %v481 = vcvt.s32.f32 %v479
    %v482 = vcvt.s32.f32 %v480
    %483 = vmin.xlane.f32.xlu0 %v482
    %v484 = vpop.xlane.xlu0 %483
    %vm485 = vcmp.eq.f32.partialorder %v482, %v484
    %v486 = vsel %vm485, %v481, inf
    %487 = vmin.xlane.f32.xlu0 %v486
    %v488 = vpop.xlane.xlu0 %487
    %v489 = vcvt.f32.s32 %v488
    %v490 = vcvt.f32.s32 %v484
    %v491 = vshll.u32 %v490, 16
    %v492 = vadd.s32 %v491, %v489
    %vm493 = vcmp.eq.s32.totalorder %v67, 3
    %v494 = vsel %vm493, %v492, %v372
    %vm495 = vcmp.eq.s32.totalorder %v492, %v67
    %v496 = vsel %vm495, 1, 0
    %v497 = vcvt.s32.f32 %v496
    %s498 = sld [smem:[#allocation2 + $0x3]]
    %p499 = scmp.gt.s32.totalorder %s498, 0
    %s500 = scalar_lea.vmem %s2, 12
    %v501 = vld [vmem:[%s500] sm:$0xf]
    %s502 = scalar_select %p499, 1, 0
    %v503 = vstv %s502
    %vm504 = vcmp.eq.s32.totalorder %v503, 1
    %v505 = vsel %vm504, %v501, %v497
    %v506 = vsel %vm136, %v505, %v445
    %v508 = vsel %vm138, %v506, 0
    %510 = vmatpush.msra.mxu0 0.0
    %511 = vmatpush.msra.mxu0 0.0
    %512 = vmatpush.msra.mxu0 0.0
    %513 = vmatpush.msra.mxu0 0.0
    %514 = vmatpush.msra.mxu0 0.0
    %515 = vmatpush.msra.mxu0 0.0
    %516 = vmatpush.msra.mxu0 0.0
    %517 = vmatpush.msra.mxu0 0.0
    %518 = vmatpush.msra.mxu0 %v60
    %519 = vmatpush.msra.mxu0 %v59
    %520 = vmatpush.msra.mxu0 %v58
    %521 = vmatpush.msra.mxu0 %v57
    %522 = vmatpush.msra.mxu0 %v56
    %523 = vmatpush.msra.mxu0 %v55
    %524 = vmatpush.msra.mxu0 %v54
    %525 = vmatpush.msra.mxu0 %v53
    %526 = vmatmul.f32.gmra.mxu0 %v508
    %v527 = vpop.f32.mrf.mxu0
    %v528 = vadd.f32 %v97, %v527
    %529 = vdwg.mxu0
    %v530 = vxor.u32 %v528, 2147483648
    %v531 = vmul.f32 %v530, 1.442695
    %v532 = vpow.pop %v531
    %v533 = vadd.f32 %v532, 1.0
    %v534 = vrcp.pop %v533
    %v535 = vmul.f32 %v533, %v534
    %v536 = vsub.f32 1.0, %v535
    %v537 = vmul.f32 %v534, %v536
    %v538 = vadd.f32 %v534, %v537
    %vm539 = vweird.f32 %v533
    %vm540 = vweird.f32 %v534
    %vm541 = vmor %vm539, %vm540
    %v542 = vsel %vm541, %v534, %v538
    %v543 = vand.u32 2147483647, %v533
    %vm544 = vcmp.eq.f32.partialorder %v543, 8.507059e+37
    %v545 = vand.u32 %v533, 2147483648
    %v546 = vor.u32 1.1754944e-38, %v545
    %v547 = vsel %vm544, %v546, %v542
    %v548 = vmul.f32 1.0, %v547
    %550 = vrot.lane.b32.xlu0 %v528, 32
    %v551 = vpop.permute.xlu0 %550
    %v553 = vmul.f32 %v548, %v551
    %555 = vrot.lane.b32.xlu0 %v553, 64
    %v556 = vpop.permute.xlu0 %555
    %v558 = vadd.f32 %v528, %v556
    %v559 = vtanh.pop %v558
    %v560 = vsub.f32 1.0, %v548
    %562 = vrot.lane.b32.xlu0 %v559, 96
    %v563 = vpop.permute.xlu0 %562
    %v565 = vmul.f32 %v560, %v563
    %v566 = vmul.f32 %v548, %v445
    %v567 = vadd.f32 %v565, %v566
    %569 = vrot.lane.b32.xlu0 %v567, 96
    %v570 = vpop.permute.xlu0 %569
    %v571 = vsel %vm136, %v570, 0
    %573 = vmatpush.msra.mxu0 0.0
    %574 = vmatpush.msra.mxu0 0.0
    %575 = vmatpush.msra.mxu0 0.0
    %576 = vmatpush.msra.mxu0 0.0
    %577 = vmatpush.msra.mxu0 0.0
    %578 = vmatpush.msra.mxu0 0.0
    %579 = vmatpush.msra.mxu0 0.0
    %580 = vmatpush.msra.mxu0 0.0
    %581 = vmatpush.msra.mxu0 0.0
    %582 = vmatpush.msra.mxu0 0.0
    %583 = vmatpush.msra.mxu0 0.0
    %584 = vmatpush.msra.mxu0 0.0
    %585 = vmatpush.msra.mxu0 %v64
    %586 = vmatpush.msra.mxu0 %v63
    %587 = vmatpush.msra.mxu0 %v62
    %588 = vmatpush.msra.mxu0 %v61
    %589 = vmatmul.f32.gmra.mxu0 %v571
    %v590 = vpop.f32.mrf.mxu0
    %v591 = vadd.f32 %v201, %v590
    %592 = vdwg.mxu0
    %s593 = scalar_lea.vmem [#allocation5], 16
    %594 = vst.msk [vmem:[%s593] sm:$0xf] %vm130, %v591
    %v595 = vsel %vm130, %v591, -inf
    %596 = vmax.xlane.f32.xlu0 %v595
    %v597 = vpop.xlane.xlu0 %596
    %vm598 = vcmp.eq.f32.partialorder %v591, %v597
    %v599 = vsel %vm598, %v67, 32
    %v600 = vsel %vm130, %v599, 2147483647
    %v601 = vand.u32 %v600, 65535
    %v602 = vshra.s32 %v600, 16
    %v603 = vcvt.s32.f32 %v601
    %v604 = vcvt.s32.f32 %v602
    %605 = vmin.xlane.f32.xlu0 %v604
    %v606 = vpop.xlane.xlu0 %605
    %vm607 = vcmp.eq.f32.partialorder %v604, %v606
    %v608 = vsel %vm607, %v603, inf
    %609 = vmin.xlane.f32.xlu0 %v608
    %v610 = vpop.xlane.xlu0 %609
    %v611 = vcvt.f32.s32 %v610
    %v612 = vcvt.f32.s32 %v606
    %v613 = vshll.u32 %v612, 16
    %v614 = vadd.s32 %v613, %v611
    %vm615 = vcmp.eq.s32.totalorder %v67, 4
    %v616 = vsel %vm615, %v614, %v494
    %vm617 = vcmp.eq.s32.totalorder %v614, %v67
    %v618 = vsel %vm617, 1, 0
    %v619 = vcvt.s32.f32 %v618
    %s620 = sld [smem:[#allocation2 + $0x4]]
    %p621 = scmp.gt.s32.totalorder %s620, 0
    %s622 = scalar_lea.vmem %s2, 16
    %v623 = vld [vmem:[%s622] sm:$0xf]
    %s624 = scalar_select %p621, 1, 0
    %v625 = vstv %s624
    %vm626 = vcmp.eq.s32.totalorder %v625, 1
    %v627 = vsel %vm626, %v623, %v619
    %v628 = vsel %vm136, %v627, %v567
    %v630 = vsel %vm138, %v628, 0
    %632 = vmatpush.msra.mxu0 0.0
    %633 = vmatpush.msra.mxu0 0.0
    %634 = vmatpush.msra.mxu0 0.0
    %635 = vmatpush.msra.mxu0 0.0
    %636 = vmatpush.msra.mxu0 0.0
    %637 = vmatpush.msra.mxu0 0.0
    %638 = vmatpush.msra.mxu0 0.0
    %639 = vmatpush.msra.mxu0 0.0
    %640 = vmatpush.msra.mxu0 %v60
    %641 = vmatpush.msra.mxu0 %v59
    %642 = vmatpush.msra.mxu0 %v58
    %643 = vmatpush.msra.mxu0 %v57
    %644 = vmatpush.msra.mxu0 %v56
    %645 = vmatpush.msra.mxu0 %v55
    %646 = vmatpush.msra.mxu0 %v54
    %647 = vmatpush.msra.mxu0 %v53
    %648 = vmatmul.f32.gmra.mxu0 %v630
    %v649 = vpop.f32.mrf.mxu0
    %v650 = vadd.f32 %v97, %v649
    %651 = vdwg.mxu0
    %v652 = vxor.u32 %v650, 2147483648
    %v653 = vmul.f32 %v652, 1.442695
    %v654 = vpow.pop %v653
    %v655 = vadd.f32 %v654, 1.0
    %v656 = vrcp.pop %v655
    %v657 = vmul.f32 %v655, %v656
    %v658 = vsub.f32 1.0, %v657
    %v659 = vmul.f32 %v656, %v658
    %v660 = vadd.f32 %v656, %v659
    %vm661 = vweird.f32 %v655
    %vm662 = vweird.f32 %v656
    %vm663 = vmor %vm661, %vm662
    %v664 = vsel %vm663, %v656, %v660
    %v665 = vand.u32 2147483647, %v655
    %vm666 = vcmp.eq.f32.partialorder %v665, 8.507059e+37
    %v667 = vand.u32 %v655, 2147483648
    %v668 = vor.u32 1.1754944e-38, %v667
    %v669 = vsel %vm666, %v668, %v664
    %v670 = vmul.f32 1.0, %v669
    %672 = vrot.lane.b32.xlu0 %v650, 32
    %v673 = vpop.permute.xlu0 %672
    %v675 = vmul.f32 %v670, %v673
    %677 = vrot.lane.b32.xlu0 %v675, 64
    %v678 = vpop.permute.xlu0 %677
    %v680 = vadd.f32 %v650, %v678
    %v681 = vtanh.pop %v680
    %v682 = vsub.f32 1.0, %v670
    %684 = vrot.lane.b32.xlu0 %v681, 96
    %v685 = vpop.permute.xlu0 %684
    %v687 = vmul.f32 %v682, %v685
    %v688 = vmul.f32 %v670, %v567
    %v689 = vadd.f32 %v687, %v688
    %691 = vrot.lane.b32.xlu0 %v689, 96
    %v692 = vpop.permute.xlu0 %691
    %v693 = vsel %vm136, %v692, 0
    %695 = vmatpush.msra.mxu0 0.0
    %696 = vmatpush.msra.mxu0 0.0
    %697 = vmatpush.msra.mxu0 0.0
    %698 = vmatpush.msra.mxu0 0.0
    %699 = vmatpush.msra.mxu0 0.0
    %700 = vmatpush.msra.mxu0 0.0
    %701 = vmatpush.msra.mxu0 0.0
    %702 = vmatpush.msra.mxu0 0.0
    %703 = vmatpush.msra.mxu0 0.0
    %704 = vmatpush.msra.mxu0 0.0
    %705 = vmatpush.msra.mxu0 0.0
    %706 = vmatpush.msra.mxu0 0.0
    %707 = vmatpush.msra.mxu0 %v64
    %708 = vmatpush.msra.mxu0 %v63
    %709 = vmatpush.msra.mxu0 %v62
    %710 = vmatpush.msra.mxu0 %v61
    %711 = vmatmul.f32.gmra.mxu0 %v693
    %v712 = vpop.f32.mrf.mxu0
    %v713 = vadd.f32 %v201, %v712
    %714 = vdwg.mxu0
    %s715 = scalar_lea.vmem [#allocation5], 20
    %716 = vst.msk [vmem:[%s715] sm:$0xf] %vm130, %v713
    %v717 = vsel %vm130, %v713, -inf
    %718 = vmax.xlane.f32.xlu0 %v717
    %v719 = vpop.xlane.xlu0 %718
    %vm720 = vcmp.eq.f32.partialorder %v713, %v719
    %v721 = vsel %vm720, %v67, 32
    %v722 = vsel %vm130, %v721, 2147483647
    %v723 = vand.u32 %v722, 65535
    %v724 = vshra.s32 %v722, 16
    %v725 = vcvt.s32.f32 %v723
    %v726 = vcvt.s32.f32 %v724
    %727 = vmin.xlane.f32.xlu0 %v726
    %v728 = vpop.xlane.xlu0 %727
    %vm729 = vcmp.eq.f32.partialorder %v726, %v728
    %v730 = vsel %vm729, %v725, inf
    %731 = vmin.xlane.f32.xlu0 %v730
    %v732 = vpop.xlane.xlu0 %731
    %v733 = vcvt.f32.s32 %v732
    %v734 = vcvt.f32.s32 %v728
    %v735 = vshll.u32 %v734, 16
    %v736 = vadd.s32 %v735, %v733
    %vm737 = vcmp.eq.s32.totalorder %v67, 5
    %v738 = vsel %vm737, %v736, %v616
    %vm739 = vcmp.eq.s32.totalorder %v736, %v67
    %v740 = vsel %vm739, 1, 0
    %v741 = vcvt.s32.f32 %v740
    %s742 = sld [smem:[#allocation2 + $0x5]]
    %p743 = scmp.gt.s32.totalorder %s742, 0
    %s744 = scalar_lea.vmem %s2, 20
    %v745 = vld [vmem:[%s744] sm:$0xf]
    %s746 = scalar_select %p743, 1, 0
    %v747 = vstv %s746
    %vm748 = vcmp.eq.s32.totalorder %v747, 1
    %v749 = vsel %vm748, %v745, %v741
    %v750 = vsel %vm136, %v749, %v689
    %v752 = vsel %vm138, %v750, 0
    %754 = vmatpush.msra.mxu0 0.0
    %755 = vmatpush.msra.mxu0 0.0
    %756 = vmatpush.msra.mxu0 0.0
    %757 = vmatpush.msra.mxu0 0.0
    %758 = vmatpush.msra.mxu0 0.0
    %759 = vmatpush.msra.mxu0 0.0
    %760 = vmatpush.msra.mxu0 0.0
    %761 = vmatpush.msra.mxu0 0.0
    %762 = vmatpush.msra.mxu0 %v60
    %763 = vmatpush.msra.mxu0 %v59
    %764 = vmatpush.msra.mxu0 %v58
    %765 = vmatpush.msra.mxu0 %v57
    %766 = vmatpush.msra.mxu0 %v56
    %767 = vmatpush.msra.mxu0 %v55
    %768 = vmatpush.msra.mxu0 %v54
    %769 = vmatpush.msra.mxu0 %v53
    %770 = vmatmul.f32.gmra.mxu0 %v752
    %v771 = vpop.f32.mrf.mxu0
    %v772 = vadd.f32 %v97, %v771
    %773 = vdwg.mxu0
    %v774 = vxor.u32 %v772, 2147483648
    %v775 = vmul.f32 %v774, 1.442695
    %v776 = vpow.pop %v775
    %v777 = vadd.f32 %v776, 1.0
    %v778 = vrcp.pop %v777
    %v779 = vmul.f32 %v777, %v778
    %v780 = vsub.f32 1.0, %v779
    %v781 = vmul.f32 %v778, %v780
    %v782 = vadd.f32 %v778, %v781
    %vm783 = vweird.f32 %v777
    %vm784 = vweird.f32 %v778
    %vm785 = vmor %vm783, %vm784
    %v786 = vsel %vm785, %v778, %v782
    %v787 = vand.u32 2147483647, %v777
    %vm788 = vcmp.eq.f32.partialorder %v787, 8.507059e+37
    %v789 = vand.u32 %v777, 2147483648
    %v790 = vor.u32 1.1754944e-38, %v789
    %v791 = vsel %vm788, %v790, %v786
    %v792 = vmul.f32 1.0, %v791
    %794 = vrot.lane.b32.xlu0 %v772, 32
    %v795 = vpop.permute.xlu0 %794
    %v797 = vmul.f32 %v792, %v795
    %799 = vrot.lane.b32.xlu0 %v797, 64
    %v800 = vpop.permute.xlu0 %799
    %v802 = vadd.f32 %v772, %v800
    %v803 = vtanh.pop %v802
    %v804 = vsub.f32 1.0, %v792
    %806 = vrot.lane.b32.xlu0 %v803, 96
    %v807 = vpop.permute.xlu0 %806
    %v809 = vmul.f32 %v804, %v807
    %v810 = vmul.f32 %v792, %v689
    %v811 = vadd.f32 %v809, %v810
    %813 = vrot.lane.b32.xlu0 %v811, 96
    %v814 = vpop.permute.xlu0 %813
    %v815 = vsel %vm136, %v814, 0
    %817 = vmatpush.msra.mxu0 0.0
    %818 = vmatpush.msra.mxu0 0.0
    %819 = vmatpush.msra.mxu0 0.0
    %820 = vmatpush.msra.mxu0 0.0
    %821 = vmatpush.msra.mxu0 0.0
    %822 = vmatpush.msra.mxu0 0.0
    %823 = vmatpush.msra.mxu0 0.0
    %824 = vmatpush.msra.mxu0 0.0
    %825 = vmatpush.msra.mxu0 0.0
    %826 = vmatpush.msra.mxu0 0.0
    %827 = vmatpush.msra.mxu0 0.0
    %828 = vmatpush.msra.mxu0 0.0
    %829 = vmatpush.msra.mxu0 %v64
    %830 = vmatpush.msra.mxu0 %v63
    %831 = vmatpush.msra.mxu0 %v62
    %832 = vmatpush.msra.mxu0 %v61
    %833 = vmatmul.f32.gmra.mxu0 %v815
    %v834 = vpop.f32.mrf.mxu0
    %v835 = vadd.f32 %v201, %v834
    %836 = vdwg.mxu0
    %s837 = scalar_lea.vmem [#allocation5], 24
    %838 = vst.msk [vmem:[%s837] sm:$0xf] %vm130, %v835
    %v839 = vsel %vm130, %v835, -inf
    %840 = vmax.xlane.f32.xlu0 %v839
    %v841 = vpop.xlane.xlu0 %840
    %vm842 = vcmp.eq.f32.partialorder %v835, %v841
    %v843 = vsel %vm842, %v67, 32
    %v844 = vsel %vm130, %v843, 2147483647
    %v845 = vand.u32 %v844, 65535
    %v846 = vshra.s32 %v844, 16
    %v847 = vcvt.s32.f32 %v845
    %v848 = vcvt.s32.f32 %v846
    %849 = vmin.xlane.f32.xlu0 %v848
    %v850 = vpop.xlane.xlu0 %849
    %vm851 = vcmp.eq.f32.partialorder %v848, %v850
    %v852 = vsel %vm851, %v847, inf
    %853 = vmin.xlane.f32.xlu0 %v852
    %v854 = vpop.xlane.xlu0 %853
    %v855 = vcvt.f32.s32 %v854
    %v856 = vcvt.f32.s32 %v850
    %v857 = vshll.u32 %v856, 16
    %v858 = vadd.s32 %v857, %v855
    %vm859 = vcmp.eq.s32.totalorder %v67, 6
    %v860 = vsel %vm859, %v858, %v738
    %vm861 = vcmp.eq.s32.totalorder %v858, %v67
    %v862 = vsel %vm861, 1, 0
    %v863 = vcvt.s32.f32 %v862
    %s864 = sld [smem:[#allocation2 + $0x6]]
    %p865 = scmp.gt.s32.totalorder %s864, 0
    %s866 = scalar_lea.vmem %s2, 24
    %v867 = vld [vmem:[%s866] sm:$0xf]
    %s868 = scalar_select %p865, 1, 0
    %v869 = vstv %s868
    %vm870 = vcmp.eq.s32.totalorder %v869, 1
    %v871 = vsel %vm870, %v867, %v863
    %v872 = vsel %vm136, %v871, %v811
    %v874 = vsel %vm138, %v872, 0
    %876 = vmatpush.msra.mxu0 0.0
    %877 = vmatpush.msra.mxu0 0.0
    %878 = vmatpush.msra.mxu0 0.0
    %879 = vmatpush.msra.mxu0 0.0
    %880 = vmatpush.msra.mxu0 0.0
    %881 = vmatpush.msra.mxu0 0.0
    %882 = vmatpush.msra.mxu0 0.0
    %883 = vmatpush.msra.mxu0 0.0
    %884 = vmatpush.msra.mxu0 %v60
    %885 = vmatpush.msra.mxu0 %v59
    %886 = vmatpush.msra.mxu0 %v58
    %887 = vmatpush.msra.mxu0 %v57
    %888 = vmatpush.msra.mxu0 %v56
    %889 = vmatpush.msra.mxu0 %v55
    %890 = vmatpush.msra.mxu0 %v54
    %891 = vmatpush.msra.mxu0 %v53
    %892 = vmatmul.f32.gmra.mxu0 %v874
    %v893 = vpop.f32.mrf.mxu0
    %v894 = vadd.f32 %v97, %v893
    %895 = vdwg.mxu0
    %v896 = vxor.u32 %v894, 2147483648
    %v897 = vmul.f32 %v896, 1.442695
    %v898 = vpow.pop %v897
    %v899 = vadd.f32 %v898, 1.0
    %v900 = vrcp.pop %v899
    %v901 = vmul.f32 %v899, %v900
    %v902 = vsub.f32 1.0, %v901
    %v903 = vmul.f32 %v900, %v902
    %v904 = vadd.f32 %v900, %v903
    %vm905 = vweird.f32 %v899
    %vm906 = vweird.f32 %v900
    %vm907 = vmor %vm905, %vm906
    %v908 = vsel %vm907, %v900, %v904
    %v909 = vand.u32 2147483647, %v899
    %vm910 = vcmp.eq.f32.partialorder %v909, 8.507059e+37
    %v911 = vand.u32 %v899, 2147483648
    %v912 = vor.u32 1.1754944e-38, %v911
    %v913 = vsel %vm910, %v912, %v908
    %v914 = vmul.f32 1.0, %v913
    %916 = vrot.lane.b32.xlu0 %v894, 32
    %v917 = vpop.permute.xlu0 %916
    %v919 = vmul.f32 %v914, %v917
    %921 = vrot.lane.b32.xlu0 %v919, 64
    %v922 = vpop.permute.xlu0 %921
    %v924 = vadd.f32 %v894, %v922
    %v925 = vtanh.pop %v924
    %v926 = vsub.f32 1.0, %v914
    %928 = vrot.lane.b32.xlu0 %v925, 96
    %v929 = vpop.permute.xlu0 %928
    %v931 = vmul.f32 %v926, %v929
    %v932 = vmul.f32 %v914, %v811
    %v933 = vadd.f32 %v931, %v932
    %935 = vrot.lane.b32.xlu0 %v933, 96
    %v936 = vpop.permute.xlu0 %935
    %v937 = vsel %vm136, %v936, 0
    %939 = vmatpush.msra.mxu0 0.0
    %940 = vmatpush.msra.mxu0 0.0
    %941 = vmatpush.msra.mxu0 0.0
    %942 = vmatpush.msra.mxu0 0.0
    %943 = vmatpush.msra.mxu0 0.0
    %944 = vmatpush.msra.mxu0 0.0
    %945 = vmatpush.msra.mxu0 0.0
    %946 = vmatpush.msra.mxu0 0.0
    %947 = vmatpush.msra.mxu0 0.0
    %948 = vmatpush.msra.mxu0 0.0
    %949 = vmatpush.msra.mxu0 0.0
    %950 = vmatpush.msra.mxu0 0.0
    %951 = vmatpush.msra.mxu0 %v64
    %952 = vmatpush.msra.mxu0 %v63
    %953 = vmatpush.msra.mxu0 %v62
    %954 = vmatpush.msra.mxu0 %v61
    %955 = vmatmul.f32.gmra.mxu0 %v937
    %v956 = vpop.f32.mrf.mxu0
    %v957 = vadd.f32 %v201, %v956
    %958 = vdwg.mxu0
    %s959 = scalar_lea.vmem [#allocation5], 28
    %960 = vst.msk [vmem:[%s959] sm:$0xf] %vm130, %v957
    %v961 = vsel %vm130, %v957, -inf
    %962 = vmax.xlane.f32.xlu0 %v961
    %v963 = vpop.xlane.xlu0 %962
    %vm964 = vcmp.eq.f32.partialorder %v957, %v963
    %v965 = vsel %vm964, %v67, 32
    %v966 = vsel %vm130, %v965, 2147483647
    %v967 = vand.u32 %v966, 65535
    %v968 = vshra.s32 %v966, 16
    %v969 = vcvt.s32.f32 %v967
    %v970 = vcvt.s32.f32 %v968
    %971 = vmin.xlane.f32.xlu0 %v970
    %v972 = vpop.xlane.xlu0 %971
    %vm973 = vcmp.eq.f32.partialorder %v970, %v972
    %v974 = vsel %vm973, %v969, inf
    %975 = vmin.xlane.f32.xlu0 %v974
    %v976 = vpop.xlane.xlu0 %975
    %v977 = vcvt.f32.s32 %v976
    %v978 = vcvt.f32.s32 %v972
    %v979 = vshll.u32 %v978, 16
    %v980 = vadd.s32 %v979, %v977
    %vm981 = vcmp.eq.s32.totalorder %v67, 7
    %v982 = vsel %vm981, %v980, %v860
    %vm983 = vcmask 60416
    %984 = vst.msk [vmem:[#allocation6] sm:$0xf] %vm983, %v982
    // Predicated region
    $region46: #{rollout_decoder_forward.1} parent=1 // pred_check
      _
    $region47: #{rollout_decoder_forward.1} parent=1 // pred_check_branch
      %986 = sbr.rel (0) target = $region49
    $region48: #{rollout_decoder_forward.1} parent=1 // pred_region
      %988 = vsyncadd [#allocation3], 0
      %s989 = sshll.u32 [#allocation5], 4
      %s990 = int_to_ptr.vmem [resolvable:$true] %s989
      %s991 = sshll.u32 %s10, 4
      %s992 = int_to_ptr.hbm [resolvable:$true] %s991
      %997 = dma.vmem_to_hbm [thread:$0]  %s990, 512, %s992, [#allocation3], 64, 64, 4
    $region49: #{rollout_decoder_forward.1} parent=1 // pred_fallthru
      _
    // Predicated region
    $region50: #{rollout_decoder_forward.1} parent=1 // pred_check
      _
    $region51: #{rollout_decoder_forward.1} parent=1 // pred_check_branch
      %999 = sbr.rel (0) target = $region53
    $region52: #{rollout_decoder_forward.1} parent=1 // pred_region
      %1001 = vsyncadd [#allocation7], 0
      %s1003 = sshll.u32 [#allocation6], 4
      %s1004 = int_to_ptr.vmem [resolvable:$true] %s1003
      %s1005 = sshll.u32 %s11, 4
      %s1006 = int_to_ptr.hbm [resolvable:$true] %s1005
      %1008 = dma.vmem_to_hbm [thread:$0]  %s1004, 64, %s1006, [#allocation7]
    $region53: #{rollout_decoder_forward.1} parent=1 // pred_fallthru
      _
    // Predicated region
    $region54: #{rollout_decoder_forward.1} parent=1 // pred_check
      _
    $region55: #{rollout_decoder_forward.1} parent=1 // pred_check_branch
      %1010 = sbr.rel (0) target = $region57
    $region56: #{rollout_decoder_forward.1} parent=1 // pred_region
      %1012 = dma.done [#allocation3], 512
    $region57: #{rollout_decoder_forward.1} parent=1 // pred_fallthru
      _
    // Predicated region
    $region58: #{rollout_decoder_forward.1} parent=1 // pred_check
      _
    $region59: #{rollout_decoder_forward.1} parent=1 // pred_check_branch
      %1014 = sbr.rel (0) target = $region61
    $region60: #{rollout_decoder_forward.1} parent=1 // pred_region
      %1016 = dma.done [#allocation7], 64
    $region61: #{rollout_decoder_forward.1} parent=1 // pred_fallthru
      _
    %1017 = vsyncpa [#allocation3], 1
    %1018 = vsyncpa [#allocation7], 1
    %1019 = vsyncpa [#allocation4], 1

</llo_original>
